<compile_context>
chip_gen: v6e
topology: v6e:2x2x1
jax: 0.10.0
libtpu: 0.0.40
codegen_flags: <defaults>
</compile_context>

<pallas_src>
import functools

import jax
import jax.numpy as jnp
from jax.experimental import pallas as pl
from jax.experimental.pallas import tpu as pltpu


# ------------------------------ kernel ----------------------------------- #

def _feature_block_kernel(x_ref, w_ref, b_ref, wf_ref, o_ref, acc_ref, *, inv_hw):
    # x_ref : (tn, C, thw)   feature tile, spatial on lanes (free NCHW reshape)
    # w_ref : (C, hidden)    b_ref : (1, hidden)    wf_ref : (hidden, 1)
    # o_ref : (tn, 1)        partial loss contribution of this feature block
    # acc_ref:(tn, C) f32    running spatial sum (f32 even for bf16 inputs)
    hw_i = pl.program_id(1)

    @pl.when(hw_i == 0)
    def _():
        acc_ref[...] = jnp.zeros_like(acc_ref)

    # Spatial partial sum: lane-axis reduce -> XLU (cheap, off the VALU path).
    acc_ref[...] += jnp.sum(x_ref[...].astype(jnp.float32), axis=-1)

    @pl.when(hw_i == pl.num_programs(1) - 1)
    def _():
        pooled = acc_ref[...] * inv_hw                                   # AdaptiveAvgPool2d(1)
        h = jnp.dot(pooled, w_ref[...], preferred_element_type=jnp.float32)
        h = jnp.maximum(h + b_ref[...], 0.0)                             # Linear + ReLU
        # Fused slice of the final loss head: h_i @ Wf_i  -> (tn, 1)
        o_ref[...] = jnp.dot(h, wf_ref[...], preferred_element_type=jnp.float32)


# --------------------------- sizing helpers -------------------------------- #

_TINY_FEATURE_BYTES = 1 << 20  # below ~1 MiB, kernel launch overhead dominates


def _round_up(x, m):
    return (x + m - 1) // m * m


def _sublane_min(dtype):
    """Minimum sublane multiple for a dtype: 8 f32, 16 bf16, 32 int8/fp8."""
    return max(8, 32 // jnp.dtype(dtype).itemsize)


def _vmem_capacity_bytes():
    """Physical VMEM per TensorCore (64 MiB v7x, 128 MiB v5e/v6e)."""
    try:
        info = pltpu.get_tpu_info()
        for name in ("vmem_capacity_bytes", "vmem_bytes"):
            v = getattr(info, name, None)
            if v:
                return int(v)
    except Exception:
        pass
    return 64 * 1024 * 1024  # conservative fallback (v7x per-TC)


def _pick_batch_tile(n):
    """Batch tile: full N for small batches, else a multiple-of-8 divisor that
    guarantees >= 2 blocks on the parallel axis (v7x has 2 TensorCores)."""
    if n < 16:
        return n
    cands = [d for d in range(8, min(n // 2, 128) + 1, 8) if n % d == 0]
    return max(cands) if cands else n


def _pick_spatial_tile(hw, per_lane_block_bytes, budget_bytes):
    """Spatial (lane-axis) tile: a multiple of 128 that evenly divides H*W, or
    the full extent.  per_lane_block_bytes = padded VMEM bytes of a 128-lane
    slice of the x tile."""
    full_bytes = pl.cdiv(hw, 128) * per_lane_block_bytes
    if hw % 128 != 0 or full_bytes <= budget_bytes:
        return hw                       # single spatial step
    max_lane_blocks = max(1, budget_bytes // per_lane_block_bytes)
    best = 128                          # 128 always divides hw here
    for d in range(128, hw, 128):
        if hw % d == 0 and d // 128 <= max_lane_blocks:
            best = max(best, d)
    return best


# ------------------------------ wrappers ---------------------------------- #

def _feature_block_partial_jnp(f, w_t, b, wf_blk):
    """Tiny deep-stage feature: plain XLA is faster than a 1x1-grid kernel."""
    pooled = jnp.mean(f.astype(jnp.float32), axis=(2, 3))
    h = jnp.maximum(pooled @ w_t + b, 0.0)
    return h @ wf_blk


def _feature_block_partial_pallas(x, w_t, b, wf_blk, vmem_cap):
    """x: (N, C, H*W) (free reshape of NCHW)  ->  (N, 1) partial loss."""
    n, c, hw = x.shape
    hidden = w_t.shape[1]
    itemsize = jnp.dtype(x.dtype).itemsize
    sub = _sublane_min(x.dtype)

    tn = _pick_batch_tile(n)

    # Per-x-tile VMEM budget, padding-aware and generation-aware:
    #   ~8 MiB on v7x (64 MiB VMEM), ~16 MiB on v5e/v6e (128 MiB VMEM).
    budget = min(vmem_cap // 8, 16 * 1024 * 1024)
    per_lane_block = tn * _round_up(c, sub) * 128 * itemsize
    thw = _pick_spatial_tile(hw, per_lane_block, budget)
    grid = (n // tn, hw // thw)

    # Padded VMEM footprints (double-buffered inputs) -> explicit vmem limit.
    x_tile_bytes = tn * _round_up(c, sub) * _round_up(thw, 128) * itemsize
    weight_bytes = 4 * (_round_up(c, 8) * _round_up(hidden, 128)       # W
                        + 8 * _round_up(hidden, 128)                   # b
                        + _round_up(hidden, 8) * 128)                  # Wf slice
    needed = 2 * x_tile_bytes + 2 * weight_bytes + (4 << 20)           # + slack
    vmem_limit = max(min(vmem_cap // 2, 64 * 1024 * 1024), needed)
    vmem_limit = min(vmem_limit, int(vmem_cap * 0.9))

    kernel = functools.partial(_feature_block_kernel, inv_hw=1.0 / float(hw))

    # Advisory cost hint (no transpose traffic anymore) so XLA can overlap
    # this HBM-bound call with the backbone that produced the features.
    cost = pl.CostEstimate(
        flops=n * hw * c + 2 * n * c * hidden + 2 * n * hidden,
        transcendentals=0,
        bytes_accessed=(n * c * hw * itemsize
                        + (c * hidden + 2 * hidden) * 4 + n * 4),
    )

    # TODO(synk): sweep pipeline_mode=pl.Buffered(3) on the x input if a trace
    # shows exposed DMA between spatial steps (check v7x 64 MiB budget first).
    return pl.pallas_call(
        kernel,
        out_shape=jax.ShapeDtypeStruct((n, 1), jnp.float32),
        grid_spec=pltpu.PrefetchScalarGridSpec(
            num_scalar_prefetch=0,
            grid=grid,
            in_specs=[
                pl.BlockSpec((tn, c, thw), lambda ni, hi: (ni, 0, hi)),
                pl.BlockSpec((c, hidden), lambda ni, hi: (0, 0)),
                pl.BlockSpec((1, hidden), lambda ni, hi: (0, 0)),
                pl.BlockSpec((hidden, 1), lambda ni, hi: (0, 0)),
            ],
            out_specs=pl.BlockSpec((tn, 1), lambda ni, hi: (ni, 0)),
            scratch_shapes=[pltpu.VMEM((tn, c), jnp.float32)],
        ),
        compiler_params=pltpu.CompilerParams(
            dimension_semantics=("parallel", "arbitrary"),
            vmem_limit_bytes=vmem_limit,
        ),
        cost_estimate=cost,
    )(x, w_t, b, wf_blk)


def loss_predictor_forward(features, params):
    """features: list of (N, C_i, H_i, W_i) arrays (NCHW, like PyTorch)."""
    # detach=True: only stops gradients; forward no-op.
    features = [jax.lax.stop_gradient(f) for f in features]
    hidden = params["blocks"][0]["w"].shape[1]
    vmem_cap = _vmem_capacity_bytes()

    partials = []
    for i, (f, p) in enumerate(zip(features, params["blocks"])):
        n, c, h, w = f.shape
        wf_blk = params["wf"][i * hidden:(i + 1) * hidden]          # (hidden, 1)
        nbytes = n * c * h * w * jnp.dtype(f.dtype).itemsize
        if nbytes < _TINY_FEATURE_BYTES:
            partials.append(_feature_block_partial_jnp(f, p["w"], p["b"], wf_blk))
        else:
            # Free reshape of contiguous NCHW: spatial lands on the lane axis.
            x = f.reshape(n, c, h * w)
            partials.append(
                _feature_block_partial_pallas(x, p["w"], p["b"], wf_blk, vmem_cap))
    # Tiny (N,1) adds + scalar bias: plain jnp, not worth a custom call.
    return sum(partials) + params["bf"]


def init_params(key, feature_channels, hidden_size):
    params = {"blocks": []}
    for fc in feature_channels:
        key, k1, k2 = jax.random.split(key, 3)
        params["blocks"].append({
            "w": jax.random.normal(k1, (fc, hidden_size), jnp.float32) * 0.05,  # (in, out)
            "b": jax.random.normal(k2, (1, hidden_size), jnp.float32) * 0.05,
        })
    key, k1, k2 = jax.random.split(key, 3)
    d = hidden_size * len(feature_channels)
    params["wf"] = jax.random.normal(k1, (d, 1), jnp.float32) * 0.05
    params["bf"] = jax.random.normal(k2, (1, 1), jnp.float32) * 0.05
    return params


def _reference(features, params):
    hs = []
    for f, p in zip(features, params["blocks"]):
        pooled = jnp.mean(f, axis=(2, 3))
        hs.append(jnp.maximum(pooled @ p["w"] + p["b"], 0.0))
    h = jnp.concatenate(hs, axis=1)
    return h @ params["wf"] + params["bf"]


if __name__ == "__main__":
    key = jax.random.PRNGKey(0)
    # Pyramid-style features: one large early-stage map (takes the Pallas
    # path), one tiny deep-stage map (takes the jnp fast path).
    feature_channels = [16, 8]
    hidden_size = 32
    batch = 2

    key, ka, kb = jax.random.split(key, 3)
    features = [
        jax.random.normal(ka, (batch, feature_channels[0], 128, 128), jnp.float32),
        jax.random.normal(kb, (batch, feature_channels[1], 8, 8), jnp.float32),
    ]
    params = init_params(key, feature_channels, hidden_size)

    out = loss_predictor_forward(features, params)
    out = jax.block_until_ready(out)

    ref = _reference(features, params)
    assert out.shape == (batch, 1), out.shape
    assert jnp.allclose(out, ref, atol=1e-4, rtol=1e-4), (out, ref)
    print("KERNEL_OK")
</pallas_src>

<mosaic_0001>
module attributes {stable_mosaic.version = 11 : i64} {
  func.func @_feature_block_kernel(%arg0: i32, %arg1: i32, %arg2: memref<2x16x16384xf32, #tpu.memory_space<vmem>>, %arg3: memref<16x32xf32, #tpu.memory_space<vmem>>, %arg4: memref<1x32xf32, #tpu.memory_space<vmem>>, %arg5: memref<32x1xf32, #tpu.memory_space<vmem>>, %arg6: memref<2x1xf32, #tpu.memory_space<vmem>>, %arg7: memref<2x16xf32, #tpu.memory_space<vmem>>) attributes {dimension_semantics = [#tpu.dimension_semantics<parallel>, #tpu.dimension_semantics<arbitrary>], iteration_bounds = array<i64: 1, 1>, scalar_prefetch = 0 : i64, scratch_operands = 1 : i64, tpu.core_type = #tpu.core_type<tc>, window_params = [{transform_indices = @transform_0, window_bounds = array<i64: 2, 16, 16384>}, {pipeline_mode = #tpu.pipeline_mode<synchronous>, transform_indices = @transform_1, window_bounds = array<i64: 16, 32>}, {pipeline_mode = #tpu.pipeline_mode<synchronous>, transform_indices = @transform_2, window_bounds = array<i64: 1, 32>}, {pipeline_mode = #tpu.pipeline_mode<synchronous>, transform_indices = @transform_3, window_bounds = array<i64: 32, 1>}, {transform_indices = @transform_4, window_bounds = array<i64: 2, 1>}]} {
    %c0_i32 = arith.constant 0 : i32
    %0 = arith.cmpi eq, %arg1, %c0_i32 : i32
    %1 = arith.extui %0 : i1 to i32
    %c0_i32_0 = arith.constant 0 : i32
    %2 = arith.cmpi ne, %1, %c0_i32_0 : i32
    scf.if %2 {
      %cst_9 = arith.constant 0.000000e+00 : f32
      %11 = vector.broadcast %cst_9 : f32 to vector<2x16xf32>
      %c0_10 = arith.constant 0 : index
      %c0_11 = arith.constant 0 : index
      %12 = vector.load %arg7[%c0_10, %c0_11] : memref<2x16xf32, #tpu.memory_space<vmem>>, vector<2x16xf32>
      tpu.vector_store %arg7[%c0_10, %c0_11], %11 {strides = array<i32>} : memref<2x16xf32, #tpu.memory_space<vmem>>, vector<2x16xf32>,
    } else {
    }
    %c0 = arith.constant 0 : index
    %c0_1 = arith.constant 0 : index
    %3 = vector.load %arg7[%c0, %c0_1] : memref<2x16xf32, #tpu.memory_space<vmem>>, vector<2x16xf32>
    %c0_2 = arith.constant 0 : index
    %c0_3 = arith.constant 0 : index
    %c0_4 = arith.constant 0 : index
    %4 = vector.load %arg2[%c0_2, %c0_3, %c0_4] : memref<2x16x16384xf32, #tpu.memory_space<vmem>>, vector<2x16x16384xf32>
    %cst = arith.constant dense<0.000000e+00> : vector<2x16xf32>
    %5 = vector.multi_reduction <add>, %4, %cst [2] : vector<2x16x16384xf32> to vector<2x16xf32>
    %6 = arith.addf %3, %5 : vector<2x16xf32>
    %c0_5 = arith.constant 0 : index
    %c0_6 = arith.constant 0 : index
    %7 = vector.load %arg7[%c0_5, %c0_6] : memref<2x16xf32, #tpu.memory_space<vmem>>, vector<2x16xf32>
    tpu.vector_store %arg7[%c0_5, %c0_6], %6 {strides = array<i32>} : memref<2x16xf32, #tpu.memory_space<vmem>>, vector<2x16xf32>,
    %c0_i32_7 = arith.constant 0 : i32
    %8 = arith.cmpi eq, %arg1, %c0_i32_7 : i32
    %9 = arith.extui %8 : i1 to i32
    %c0_i32_8 = arith.constant 0 : i32
    %10 = arith.cmpi ne, %9, %c0_i32_8 : i32
    scf.if %10 {
      %c0_9 = arith.constant 0 : index
      %c0_10 = arith.constant 0 : index
      %11 = vector.load %arg7[%c0_9, %c0_10] : memref<2x16xf32, #tpu.memory_space<vmem>>, vector<2x16xf32>
      %cst_11 = arith.constant 6.10351563E-5 : f32
      %12 = vector.broadcast %cst_11 : f32 to vector<2x16xf32>
      %13 = arith.mulf %11, %12 : vector<2x16xf32>
      %c0_12 = arith.constant 0 : index
      %c0_13 = arith.constant 0 : index
      %14 = vector.load %arg3[%c0_12, %c0_13] : memref<16x32xf32, #tpu.memory_space<vmem>>, vector<16x32xf32>
      %cst_14 = arith.constant dense<0.000000e+00> : vector<2x32xf32>
      %15 = tpu.matmul %13, %14, %cst_14 {dimension_numbers = #tpu.dot_dimension_numbers<[1], [0], [0], [1], [0, 0, 1, 1], [], []>} : vector<2x16xf32>, vector<16x32xf32>, vector<2x32xf32> -> vector<2x32xf32>
      %c0_15 = arith.constant 0 : index
      %c0_16 = arith.constant 0 : index
      %16 = vector.load %arg4[%c0_15, %c0_16] : memref<1x32xf32, #tpu.memory_space<vmem>>, vector<1x32xf32>
      %17 = vector.broadcast %16 : vector<1x32xf32> to vector<2x32xf32>
      %18 = arith.addf %15, %17 : vector<2x32xf32>
      %cst_17 = arith.constant 0.000000e+00 : f32
      %19 = vector.broadcast %cst_17 : f32 to vector<2x32xf32>
      %20 = arith.maximumf %18, %19 : vector<2x32xf32>
      %c0_18 = arith.constant 0 : index
      %c0_19 = arith.constant 0 : index
      %21 = vector.load %arg5[%c0_18, %c0_19] : memref<32x1xf32, #tpu.memory_space<vmem>>, vector<32x1xf32>
      %cst_20 = arith.constant dense<0.000000e+00> : vector<2x1xf32>
      %22 = tpu.matmul %20, %21, %cst_20 {dimension_numbers = #tpu.dot_dimension_numbers<[1], [0], [0], [1], [0, 0, 1, 1], [], []>} : vector<2x32xf32>, vector<32x1xf32>, vector<2x1xf32> -> vector<2x1xf32>
      %c0_21 = arith.constant 0 : index
      %c0_22 = arith.constant 0 : index
      %23 = vector.load %arg6[%c0_21, %c0_22] : memref<2x1xf32, #tpu.memory_space<vmem>>, vector<2x1xf32>
      tpu.vector_store %arg6[%c0_21, %c0_22], %22 {strides = array<i32>} : memref<2x1xf32, #tpu.memory_space<vmem>>, vector<2x1xf32>,
    } else {
    }
    return
  }
  func.func @transform_0(%arg0: i32, %arg1: i32) -> (i32, i32, i32) {
    %c0_i32 = arith.constant 0 : i32
    %c0_i32_0 = arith.constant 0 : i32
    return %arg0, %c0_i32, %arg1 : i32, i32, i32
  }
  func.func @transform_1(%arg0: i32, %arg1: i32) -> (i32, i32) {
    %c0_i32 = arith.constant 0 : i32
    %c0_i32_0 = arith.constant 0 : i32
    %c0_i32_1 = arith.constant 0 : i32
    return %c0_i32, %c0_i32_0 : i32, i32
  }
  func.func @transform_2(%arg0: i32, %arg1: i32) -> (i32, i32) {
    %c0_i32 = arith.constant 0 : i32
    %c0_i32_0 = arith.constant 0 : i32
    %c0_i32_1 = arith.constant 0 : i32
    return %c0_i32, %c0_i32_0 : i32, i32
  }
  func.func @transform_3(%arg0: i32, %arg1: i32) -> (i32, i32) {
    %c0_i32 = arith.constant 0 : i32
    %c0_i32_0 = arith.constant 0 : i32
    %c0_i32_1 = arith.constant 0 : i32
    return %c0_i32, %c0_i32_0 : i32, i32
  }
  func.func @transform_4(%arg0: i32, %arg1: i32) -> (i32, i32) {
    %c0_i32 = arith.constant 0 : i32
    %c0_i32_0 = arith.constant 0 : i32
    return %arg0, %c0_i32 : i32, i32
  }
}

</mosaic_0001>

<llo_original>
// kernel: tpu_custom_call.1
$region0: #{tpu_custom_call.1}
  #allocation0 [shape = 'u32[]', space=smem, size = 0x4, offset = 0x4, fixed_abs, tag = 'smem constant byte address 0x4 - core index']
  #allocation1 [shape = 'u32[144,128]{1,0:T(1,128)}', space=vmem, size = 0x12000, scoped, tag = 'internal scratch']
  #allocation2 [shape = 'f32[2,16]{1,0:T(2,128)}', space=vmem, size = 0x400, scoped, tag = 'scratch operand']
  %s0 = inlined_call_operand.hbm [shape: f32[2,16,16384], index: 0, kind: input, shape index: {}]
  %s1 = inlined_call_operand.hbm [shape: f32[16,32], index: 1, kind: input, shape index: {}]
  %s2 = inlined_call_operand.hbm [shape: f32[1,32], index: 2, kind: input, shape index: {}]
  %s3 = inlined_call_operand.vmem [shape: f32[32,1], index: 3, kind: input, shape index: {}]
  %s4 = inlined_call_operand.vmem [shape: f32[2,1], index: 4, kind: output, shape index: {}]
  %s5 = sld [smem:[#allocation0]]
  $region46: #{tpu_custom_call.1} parent=0
    _
  %s7 = ssub.s32 1, %s5
  %s8 = scalar_select 0, %s7, %s5
  $region1: #{tpu_custom_call.1} parent=0
    #allocation3 [shape = 'u8[2097152]{0}', space=vmem, size = 0x200000, scoped, tag = 'input window, operand 0, single buffered']
    #allocation4 [shape = 's32[1]{0}', space=sflag, size = 0x4, scoped, tag = 'scoped memory for tpu_custom_call.1']
    #allocation5 [shape = 'u8[8192]{0}', space=vmem, size = 0x2000, scoped, tag = 'input window, operand 1, single buffered']
    #allocation6 [shape = 's32[1]{0}', space=sflag, size = 0x4, scoped, tag = 'scoped memory for tpu_custom_call.1']
    #allocation7 [shape = 'u8[512]{0}', space=vmem, size = 0x400, scoped, tag = 'input window, operand 2, single buffered']
    %9 = vsyncpa [#allocation4], 0
    %10 = vsyncpa [#allocation6], 0
    // Predicated region
    $region2: #{tpu_custom_call.1} parent=1 // pred_check
      _
    $region3: #{tpu_custom_call.1} parent=1 // pred_check_branch
      %12 = sbr.rel (0) target = $region5
    $region4: #{tpu_custom_call.1} parent=1 // pred_region
      %s14 = ssub.s32 65536, 65536
      %15 = vsyncadd [#allocation4], %s14
      %s16 = sshll.u32 [#allocation3], 4
      %s17 = int_to_ptr.vmem [resolvable:$true] %s16
      %22 = dma.hbm_to_vmem [thread:$0]  %s0, 65536, %s17, [#allocation4], 16384, 16384, 1024
    $region5: #{tpu_custom_call.1} parent=1 // pred_fallthru
      _
    // Predicated region
    $region6: #{tpu_custom_call.1} parent=1 // pred_check
      _
    $region7: #{tpu_custom_call.1} parent=1 // pred_check_branch
      %24 = sbr.rel (0) target = $region9
    $region8: #{tpu_custom_call.1} parent=1 // pred_region
      %s26 = ssub.s32 256, 256
      %27 = vsyncadd [#allocation6], %s26
      %s28 = sshll.u32 [#allocation5], 4
      %s29 = int_to_ptr.vmem [resolvable:$true] %s28
      %34 = dma.hbm_to_vmem [thread:$0]  %s1, 256, %s29, [#allocation6], 128, 128, 8
    $region9: #{tpu_custom_call.1} parent=1 // pred_fallthru
      _
    // Predicated region
    $region10: #{tpu_custom_call.1} parent=1 // pred_check
      _
    $region11: #{tpu_custom_call.1} parent=1 // pred_check_branch
      %36 = sbr.rel (0) target = $region13
    $region12: #{tpu_custom_call.1} parent=1 // pred_region
      %s38 = ssub.s32 16, 16
      %39 = vsyncadd [#allocation6], %s38
      %s41 = sshll.u32 [#allocation7], 4
      %s42 = int_to_ptr.vmem [resolvable:$true] %s41
      %44 = dma.hbm_to_vmem [thread:$0]  %s2, 16, %s42, [#allocation6]
    $region13: #{tpu_custom_call.1} parent=1 // pred_fallthru
      _
    // Predicated region
    $region14: #{tpu_custom_call.1} parent=1 // pred_check
      _
    $region15: #{tpu_custom_call.1} parent=1 // pred_check_branch
      %46 = sbr.rel (0) target = $region17
    $region16: #{tpu_custom_call.1} parent=1 // pred_region
      _
    $region17: #{tpu_custom_call.1} parent=1 // pred_fallthru
      _
    // Predicated region
    $region18: #{tpu_custom_call.1} parent=1 // pred_check
      _
    $region19: #{tpu_custom_call.1} parent=1 // pred_check_branch
      %48 = sbr.rel (0) target = $region21
    $region20: #{tpu_custom_call.1} parent=1 // pred_region
      %49 = dma.done [#allocation4], 65536
    $region21: #{tpu_custom_call.1} parent=1 // pred_fallthru
      _
    // Predicated region
    $region22: #{tpu_custom_call.1} parent=1 // pred_check
      _
    $region23: #{tpu_custom_call.1} parent=1 // pred_check_branch
      %51 = sbr.rel (0) target = $region25
    $region24: #{tpu_custom_call.1} parent=1 // pred_region
      %52 = dma.done [#allocation6], 256
    $region25: #{tpu_custom_call.1} parent=1 // pred_fallthru
      _
    // Predicated region
    $region26: #{tpu_custom_call.1} parent=1 // pred_check
      _
    $region27: #{tpu_custom_call.1} parent=1 // pred_check_branch
      %54 = sbr.rel (0) target = $region29
    $region28: #{tpu_custom_call.1} parent=1 // pred_region
      %55 = dma.done [#allocation6], 16
    $region29: #{tpu_custom_call.1} parent=1 // pred_fallthru
      _
    %p56 = scmp.eq.s32.totalorder 0, 0
    // Predicated region
    $region30: #{tpu_custom_call.1} parent=1 // pred_check
      %p57 = pneg %p56
    $region31: #{tpu_custom_call.1} parent=1 // pred_check_branch
      %59 = sbr.rel (%p57) target = $region33
    $region32: #{tpu_custom_call.1} parent=1 // pred_region
      %vm60 = vcmask 123904
      %61 = vst.msk [vmem:[#allocation2] sm:$0x3] %vm60, 0.0
    $region33: #{tpu_custom_call.1} parent=1 // pred_fallthru
      _
    %v62 = vld [vmem:[#allocation2] sm:$0x3]
    %v63 = vld [vmem:[#allocation3] sm:$0xff]
    %v64 = vld [vmem:[#allocation3 + $0x8] sm:$0xff]
    %v65 = vld [vmem:[#allocation3 + $0x10] sm:$0xff]
    %v66 = vld [vmem:[#allocation3 + $0x18] sm:$0xff]
    %v67 = vld [vmem:[#allocation3 + $0x20] sm:$0xff]
    %v68 = vld [vmem:[#allocation3 + $0x28] sm:$0xff]
    %v69 = vld [vmem:[#allocation3 + $0x30] sm:$0xff]
    %v70 = vld [vmem:[#allocation3 + $0x38] sm:$0xff]
    %v71 = vld [vmem:[#allocation3 + $0x40] sm:$0xff]
    %v72 = vld [vmem:[#allocation3 + $0x48] sm:$0xff]
    %v73 = vld [vmem:[#allocation3 + $0x50] sm:$0xff]
    %v74 = vld [vmem:[#allocation3 + $0x58] sm:$0xff]
    %v75 = vld [vmem:[#allocation3 + $0x60] sm:$0xff]
    %v76 = vld [vmem:[#allocation3 + $0x68] sm:$0xff]
    %v77 = vld [vmem:[#allocation3 + $0x70] sm:$0xff]
    %v78 = vld [vmem:[#allocation3 + $0x78] sm:$0xff]
    %v79 = vld [vmem:[#allocation3 + $0x80] sm:$0xff]
    %v80 = vld [vmem:[#allocation3 + $0x88] sm:$0xff]
    %v81 = vld [vmem:[#allocation3 + $0x90] sm:$0xff]
    %v82 = vld [vmem:[#allocation3 + $0x98] sm:$0xff]
    %v83 = vld [vmem:[#allocation3 + $0xa0] sm:$0xff]
    %v84 = vld [vmem:[#allocation3 + $0xa8] sm:$0xff]
    %v85 = vld [vmem:[#allocation3 + $0xb0] sm:$0xff]
    %v86 = vld [vmem:[#allocation3 + $0xb8] sm:$0xff]
    %v87 = vld [vmem:[#allocation3 + $0xc0] sm:$0xff]
    %v88 = vld [vmem:[#allocation3 + $0xc8] sm:$0xff]
    %v89 = vld [vmem:[#allocation3 + $0xd0] sm:$0xff]
    %v90 = vld [vmem:[#allocation3 + $0xd8] sm:$0xff]
    %v91 = vld [vmem:[#allocation3 + $0xe0] sm:$0xff]
    %v92 = vld [vmem:[#allocation3 + $0xe8] sm:$0xff]
    %v93 = vld [vmem:[#allocation3 + $0xf0] sm:$0xff]
    %v94 = vld [vmem:[#allocation3 + $0xf8] sm:$0xff]
    %v95 = vld [vmem:[#allocation3 + $0x100] sm:$0xff]
    %v96 = vld [vmem:[#allocation3 + $0x108] sm:$0xff]
    %v97 = vld [vmem:[#allocation3 + $0x110] sm:$0xff]
    %v98 = vld [vmem:[#allocation3 + $0x118] sm:$0xff]
    %v99 = vld [vmem:[#allocation3 + $0x120] sm:$0xff]
    %v100 = vld [vmem:[#allocation3 + $0x128] sm:$0xff]
    %v101 = vld [vmem:[#allocation3 + $0x130] sm:$0xff]
    %v102 = vld [vmem:[#allocation3 + $0x138] sm:$0xff]
    %v103 = vld [vmem:[#allocation3 + $0x140] sm:$0xff]
    %v104 = vld [vmem:[#allocation3 + $0x148] sm:$0xff]
    %v105 = vld [vmem:[#allocation3 + $0x150] sm:$0xff]
    %v106 = vld [vmem:[#allocation3 + $0x158] sm:$0xff]
    %v107 = vld [vmem:[#allocation3 + $0x160] sm:$0xff]
    %v108 = vld [vmem:[#allocation3 + $0x168] sm:$0xff]
    %v109 = vld [vmem:[#allocation3 + $0x170] sm:$0xff]
    %v110 = vld [vmem:[#allocation3 + $0x178] sm:$0xff]
    %v111 = vld [vmem:[#allocation3 + $0x180] sm:$0xff]
    %v112 = vld [vmem:[#allocation3 + $0x188] sm:$0xff]
    %v113 = vld [vmem:[#allocation3 + $0x190] sm:$0xff]
    %v114 = vld [vmem:[#allocation3 + $0x198] sm:$0xff]
    %v115 = vld [vmem:[#allocation3 + $0x1a0] sm:$0xff]
    %v116 = vld [vmem:[#allocation3 + $0x1a8] sm:$0xff]
    %v117 = vld [vmem:[#allocation3 + $0x1b0] sm:$0xff]
    %v118 = vld [vmem:[#allocation3 + $0x1b8] sm:$0xff]
    %v119 = vld [vmem:[#allocation3 + $0x1c0] sm:$0xff]
    %v120 = vld [vmem:[#allocation3 + $0x1c8] sm:$0xff]
    %v121 = vld [vmem:[#allocation3 + $0x1d0] sm:$0xff]
    %v122 = vld [vmem:[#allocation3 + $0x1d8] sm:$0xff]
    %v123 = vld [vmem:[#allocation3 + $0x1e0] sm:$0xff]
    %v124 = vld [vmem:[#allocation3 + $0x1e8] sm:$0xff]
    %v125 = vld [vmem:[#allocation3 + $0x1f0] sm:$0xff]
    %v126 = vld [vmem:[#allocation3 + $0x1f8] sm:$0xff]
    %v127 = vld [vmem:[#allocation3 + $0x200] sm:$0xff]
    %v128 = vld [vmem:[#allocation3 + $0x208] sm:$0xff]
    %v129 = vld [vmem:[#allocation3 + $0x210] sm:$0xff]
    %v130 = vld [vmem:[#allocation3 + $0x218] sm:$0xff]
    %v131 = vld [vmem:[#allocation3 + $0x220] sm:$0xff]
    %v132 = vld [vmem:[#allocation3 + $0x228] sm:$0xff]
    %v133 = vld [vmem:[#allocation3 + $0x230] sm:$0xff]
    %v134 = vld [vmem:[#allocation3 + $0x238] sm:$0xff]
    %v135 = vld [vmem:[#allocation3 + $0x240] sm:$0xff]
    %v136 = vld [vmem:[#allocation3 + $0x248] sm:$0xff]
    %v137 = vld [vmem:[#allocation3 + $0x250] sm:$0xff]
    %v138 = vld [vmem:[#allocation3 + $0x258] sm:$0xff]
    %v139 = vld [vmem:[#allocation3 + $0x260] sm:$0xff]
    %v140 = vld [vmem:[#allocation3 + $0x268] sm:$0xff]
    %v141 = vld [vmem:[#allocation3 + $0x270] sm:$0xff]
    %v142 = vld [vmem:[#allocation3 + $0x278] sm:$0xff]
    %v143 = vld [vmem:[#allocation3 + $0x280] sm:$0xff]
    %v144 = vld [vmem:[#allocation3 + $0x288] sm:$0xff]
    %v145 = vld [vmem:[#allocation3 + $0x290] sm:$0xff]
    %v146 = vld [vmem:[#allocation3 + $0x298] sm:$0xff]
    %v147 = vld [vmem:[#allocation3 + $0x2a0] sm:$0xff]
    %v148 = vld [vmem:[#allocation3 + $0x2a8] sm:$0xff]
    %v149 = vld [vmem:[#allocation3 + $0x2b0] sm:$0xff]
    %v150 = vld [vmem:[#allocation3 + $0x2b8] sm:$0xff]
    %v151 = vld [vmem:[#allocation3 + $0x2c0] sm:$0xff]
    %v152 = vld [vmem:[#allocation3 + $0x2c8] sm:$0xff]
    %v153 = vld [vmem:[#allocation3 + $0x2d0] sm:$0xff]
    %v154 = vld [vmem:[#allocation3 + $0x2d8] sm:$0xff]
    %v155 = vld [vmem:[#allocation3 + $0x2e0] sm:$0xff]
    %v156 = vld [vmem:[#allocation3 + $0x2e8] sm:$0xff]
    %v157 = vld [vmem:[#allocation3 + $0x2f0] sm:$0xff]
    %v158 = vld [vmem:[#allocation3 + $0x2f8] sm:$0xff]
    %v159 = vld [vmem:[#allocation3 + $0x300] sm:$0xff]
    %v160 = vld [vmem:[#allocation3 + $0x308] sm:$0xff]
    %v161 = vld [vmem:[#allocation3 + $0x310] sm:$0xff]
    %v162 = vld [vmem:[#allocation3 + $0x318] sm:$0xff]
    %v163 = vld [vmem:[#allocation3 + $0x320] sm:$0xff]
    %v164 = vld [vmem:[#allocation3 + $0x328] sm:$0xff]
    %v165 = vld [vmem:[#allocation3 + $0x330] sm:$0xff]
    %v166 = vld [vmem:[#allocation3 + $0x338] sm:$0xff]
    %v167 = vld [vmem:[#allocation3 + $0x340] sm:$0xff]
    %v168 = vld [vmem:[#allocation3 + $0x348] sm:$0xff]
    %v169 = vld [vmem:[#allocation3 + $0x350] sm:$0xff]
    %v170 = vld [vmem:[#allocation3 + $0x358] sm:$0xff]
    %v171 = vld [vmem:[#allocation3 + $0x360] sm:$0xff]
    %v172 = vld [vmem:[#allocation3 + $0x368] sm:$0xff]
    %v173 = vld [vmem:[#allocation3 + $0x370] sm:$0xff]
    %v174 = vld [vmem:[#allocation3 + $0x378] sm:$0xff]
    %v175 = vld [vmem:[#allocation3 + $0x380] sm:$0xff]
    %v176 = vld [vmem:[#allocation3 + $0x388] sm:$0xff]
    %v177 = vld [vmem:[#allocation3 + $0x390] sm:$0xff]
    %v178 = vld [vmem:[#allocation3 + $0x398] sm:$0xff]
    %v179 = vld [vmem:[#allocation3 + $0x3a0] sm:$0xff]
    %v180 = vld [vmem:[#allocation3 + $0x3a8] sm:$0xff]
    %v181 = vld [vmem:[#allocation3 + $0x3b0] sm:$0xff]
    %v182 = vld [vmem:[#allocation3 + $0x3b8] sm:$0xff]
    %v183 = vld [vmem:[#allocation3 + $0x3c0] sm:$0xff]
    %v184 = vld [vmem:[#allocation3 + $0x3c8] sm:$0xff]
    %v185 = vld [vmem:[#allocation3 + $0x3d0] sm:$0xff]
    %v186 = vld [vmem:[#allocation3 + $0x3d8] sm:$0xff]
    %v187 = vld [vmem:[#allocation3 + $0x3e0] sm:$0xff]
    %v188 = vld [vmem:[#allocation3 + $0x3e8] sm:$0xff]
    %v189 = vld [vmem:[#allocation3 + $0x3f0] sm:$0xff]
    %v190 = vld [vmem:[#allocation3 + $0x3f8] sm:$0xff]
    %v191 = vld [vmem:[#allocation3 + $0x400] sm:$0xff]
    %v192 = vld [vmem:[#allocation3 + $0x408] sm:$0xff]
    %v193 = vld [vmem:[#allocation3 + $0x410] sm:$0xff]
    %v194 = vld [vmem:[#allocation3 + $0x418] sm:$0xff]
    %v195 = vld [vmem:[#allocation3 + $0x420] sm:$0xff]
    %v196 = vld [vmem:[#allocation3 + $0x428] sm:$0xff]
    %v197 = vld [vmem:[#allocation3 + $0x430] sm:$0xff]
    %v198 = vld [vmem:[#allocation3 + $0x438] sm:$0xff]
    %v199 = vld [vmem:[#allocation3 + $0x440] sm:$0xff]
    %v200 = vld [vmem:[#allocation3 + $0x448] sm:$0xff]
    %v201 = vld [vmem:[#allocation3 + $0x450] sm:$0xff]
    %v202 = vld [vmem:[#allocation3 + $0x458] sm:$0xff]
    %v203 = vld [vmem:[#allocation3 + $0x460] sm:$0xff]
    %v204 = vld [vmem:[#allocation3 + $0x468] sm:$0xff]
    %v205 = vld [vmem:[#allocation3 + $0x470] sm:$0xff]
    %v206 = vld [vmem:[#allocation3 + $0x478] sm:$0xff]
    %v207 = vld [vmem:[#allocation3 + $0x480] sm:$0xff]
    %v208 = vld [vmem:[#allocation3 + $0x488] sm:$0xff]
    %v209 = vld [vmem:[#allocation3 + $0x490] sm:$0xff]
    %v210 = vld [vmem:[#allocation3 + $0x498] sm:$0xff]
    %v211 = vld [vmem:[#allocation3 + $0x4a0] sm:$0xff]
    %v212 = vld [vmem:[#allocation3 + $0x4a8] sm:$0xff]
    %v213 = vld [vmem:[#allocation3 + $0x4b0] sm:$0xff]
    %v214 = vld [vmem:[#allocation3 + $0x4b8] sm:$0xff]
    %v215 = vld [vmem:[#allocation3 + $0x4c0] sm:$0xff]
    %v216 = vld [vmem:[#allocation3 + $0x4c8] sm:$0xff]
    %v217 = vld [vmem:[#allocation3 + $0x4d0] sm:$0xff]
    %v218 = vld [vmem:[#allocation3 + $0x4d8] sm:$0xff]
    %v219 = vld [vmem:[#allocation3 + $0x4e0] sm:$0xff]
    %v220 = vld [vmem:[#allocation3 + $0x4e8] sm:$0xff]
    %v221 = vld [vmem:[#allocation3 + $0x4f0] sm:$0xff]
    %v222 = vld [vmem:[#allocation3 + $0x4f8] sm:$0xff]
    %v223 = vld [vmem:[#allocation3 + $0x500] sm:$0xff]
    %v224 = vld [vmem:[#allocation3 + $0x508] sm:$0xff]
    %v225 = vld [vmem:[#allocation3 + $0x510] sm:$0xff]
    %v226 = vld [vmem:[#allocation3 + $0x518] sm:$0xff]
    %v227 = vld [vmem:[#allocation3 + $0x520] sm:$0xff]
    %v228 = vld [vmem:[#allocation3 + $0x528] sm:$0xff]
    %v229 = vld [vmem:[#allocation3 + $0x530] sm:$0xff]
    %v230 = vld [vmem:[#allocation3 + $0x538] sm:$0xff]
    %v231 = vld [vmem:[#allocation3 + $0x540] sm:$0xff]
    %v232 = vld [vmem:[#allocation3 + $0x548] sm:$0xff]
    %v233 = vld [vmem:[#allocation3 + $0x550] sm:$0xff]
    %v234 = vld [vmem:[#allocation3 + $0x558] sm:$0xff]
    %v235 = vld [vmem:[#allocation3 + $0x560] sm:$0xff]
    %v236 = vld [vmem:[#allocation3 + $0x568] sm:$0xff]
    %v237 = vld [vmem:[#allocation3 + $0x570] sm:$0xff]
    %v238 = vld [vmem:[#allocation3 + $0x578] sm:$0xff]
    %v239 = vld [vmem:[#allocation3 + $0x580] sm:$0xff]
    %v240 = vld [vmem:[#allocation3 + $0x588] sm:$0xff]
    %v241 = vld [vmem:[#allocation3 + $0x590] sm:$0xff]
    %v242 = vld [vmem:[#allocation3 + $0x598] sm:$0xff]
    %v243 = vld [vmem:[#allocation3 + $0x5a0] sm:$0xff]
    %v244 = vld [vmem:[#allocation3 + $0x5a8] sm:$0xff]
    %v245 = vld [vmem:[#allocation3 + $0x5b0] sm:$0xff]
    %v246 = vld [vmem:[#allocation3 + $0x5b8] sm:$0xff]
    %v247 = vld [vmem:[#allocation3 + $0x5c0] sm:$0xff]
    %v248 = vld [vmem:[#allocation3 + $0x5c8] sm:$0xff]
    %v249 = vld [vmem:[#allocation3 + $0x5d0] sm:$0xff]
    %v250 = vld [vmem:[#allocation3 + $0x5d8] sm:$0xff]
    %v251 = vld [vmem:[#allocation3 + $0x5e0] sm:$0xff]
    %v252 = vld [vmem:[#allocation3 + $0x5e8] sm:$0xff]
    %v253 = vld [vmem:[#allocation3 + $0x5f0] sm:$0xff]
    %v254 = vld [vmem:[#allocation3 + $0x5f8] sm:$0xff]
    %v255 = vld [vmem:[#allocation3 + $0x600] sm:$0xff]
    %v256 = vld [vmem:[#allocation3 + $0x608] sm:$0xff]
    %v257 = vld [vmem:[#allocation3 + $0x610] sm:$0xff]
    %v258 = vld [vmem:[#allocation3 + $0x618] sm:$0xff]
    %v259 = vld [vmem:[#allocation3 + $0x620] sm:$0xff]
    %v260 = vld [vmem:[#allocation3 + $0x628] sm:$0xff]
    %v261 = vld [vmem:[#allocation3 + $0x630] sm:$0xff]
    %v262 = vld [vmem:[#allocation3 + $0x638] sm:$0xff]
    %v263 = vld [vmem:[#allocation3 + $0x640] sm:$0xff]
    %v264 = vld [vmem:[#allocation3 + $0x648] sm:$0xff]
    %v265 = vld [vmem:[#allocation3 + $0x650] sm:$0xff]
    %v266 = vld [vmem:[#allocation3 + $0x658] sm:$0xff]
    %v267 = vld [vmem:[#allocation3 + $0x660] sm:$0xff]
    %v268 = vld [vmem:[#allocation3 + $0x668] sm:$0xff]
    %v269 = vld [vmem:[#allocation3 + $0x670] sm:$0xff]
    %v270 = vld [vmem:[#allocation3 + $0x678] sm:$0xff]
    %v271 = vld [vmem:[#allocation3 + $0x680] sm:$0xff]
    %v272 = vld [vmem:[#allocation3 + $0x688] sm:$0xff]
    %v273 = vld [vmem:[#allocation3 + $0x690] sm:$0xff]
    %v274 = vld [vmem:[#allocation3 + $0x698] sm:$0xff]
    %v275 = vld [vmem:[#allocation3 + $0x6a0] sm:$0xff]
    %v276 = vld [vmem:[#allocation3 + $0x6a8] sm:$0xff]
    %v277 = vld [vmem:[#allocation3 + $0x6b0] sm:$0xff]
    %v278 = vld [vmem:[#allocation3 + $0x6b8] sm:$0xff]
    %v279 = vld [vmem:[#allocation3 + $0x6c0] sm:$0xff]
    %v280 = vld [vmem:[#allocation3 + $0x6c8] sm:$0xff]
    %v281 = vld [vmem:[#allocation3 + $0x6d0] sm:$0xff]
    %v282 = vld [vmem:[#allocation3 + $0x6d8] sm:$0xff]
    %v283 = vld [vmem:[#allocation3 + $0x6e0] sm:$0xff]
    %v284 = vld [vmem:[#allocation3 + $0x6e8] sm:$0xff]
    %v285 = vld [vmem:[#allocation3 + $0x6f0] sm:$0xff]
    %v286 = vld [vmem:[#allocation3 + $0x6f8] sm:$0xff]
    %v287 = vld [vmem:[#allocation3 + $0x700] sm:$0xff]
    %v288 = vld [vmem:[#allocation3 + $0x708] sm:$0xff]
    %v289 = vld [vmem:[#allocation3 + $0x710] sm:$0xff]
    %v290 = vld [vmem:[#allocation3 + $0x718] sm:$0xff]
    %v291 = vld [vmem:[#allocation3 + $0x720] sm:$0xff]
    %v292 = vld [vmem:[#allocation3 + $0x728] sm:$0xff]
    %v293 = vld [vmem:[#allocation3 + $0x730] sm:$0xff]
    %v294 = vld [vmem:[#allocation3 + $0x738] sm:$0xff]
    %v295 = vld [vmem:[#allocation3 + $0x740] sm:$0xff]
    %v296 = vld [vmem:[#allocation3 + $0x748] sm:$0xff]
    %v297 = vld [vmem:[#allocation3 + $0x750] sm:$0xff]
    %v298 = vld [vmem:[#allocation3 + $0x758] sm:$0xff]
    %v299 = vld [vmem:[#allocation3 + $0x760] sm:$0xff]
    %v300 = vld [vmem:[#allocation3 + $0x768] sm:$0xff]
    %v301 = vld [vmem:[#allocation3 + $0x770] sm:$0xff]
    %v302 = vld [vmem:[#allocation3 + $0x778] sm:$0xff]
    %v303 = vld [vmem:[#allocation3 + $0x780] sm:$0xff]
    %v304 = vld [vmem:[#allocation3 + $0x788] sm:$0xff]
    %v305 = vld [vmem:[#allocation3 + $0x790] sm:$0xff]
    %v306 = vld [vmem:[#allocation3 + $0x798] sm:$0xff]
    %v307 = vld [vmem:[#allocation3 + $0x7a0] sm:$0xff]
    %v308 = vld [vmem:[#allocation3 + $0x7a8] sm:$0xff]
    %v309 = vld [vmem:[#allocation3 + $0x7b0] sm:$0xff]
    %v310 = vld [vmem:[#allocation3 + $0x7b8] sm:$0xff]
    %v311 = vld [vmem:[#allocation3 + $0x7c0] sm:$0xff]
    %v312 = vld [vmem:[#allocation3 + $0x7c8] sm:$0xff]
    %v313 = vld [vmem:[#allocation3 + $0x7d0] sm:$0xff]
    %v314 = vld [vmem:[#allocation3 + $0x7d8] sm:$0xff]
    %v315 = vld [vmem:[#allocation3 + $0x7e0] sm:$0xff]
    %v316 = vld [vmem:[#allocation3 + $0x7e8] sm:$0xff]
    %v317 = vld [vmem:[#allocation3 + $0x7f0] sm:$0xff]
    %v318 = vld [vmem:[#allocation3 + $0x7f8] sm:$0xff]
    %v319 = vld [vmem:[#allocation3 + $0x800] sm:$0xff]
    %v320 = vld [vmem:[#allocation3 + $0x808] sm:$0xff]
    %v321 = vld [vmem:[#allocation3 + $0x810] sm:$0xff]
    %v322 = vld [vmem:[#allocation3 + $0x818] sm:$0xff]
    %v323 = vld [vmem:[#allocation3 + $0x820] sm:$0xff]
    %v324 = vld [vmem:[#allocation3 + $0x828] sm:$0xff]
    %v325 = vld [vmem:[#allocation3 + $0x830] sm:$0xff]
    %v326 = vld [vmem:[#allocation3 + $0x838] sm:$0xff]
    %v327 = vld [vmem:[#allocation3 + $0x840] sm:$0xff]
    %v328 = vld [vmem:[#allocation3 + $0x848] sm:$0xff]
    %v329 = vld [vmem:[#allocation3 + $0x850] sm:$0xff]
    %v330 = vld [vmem:[#allocation3 + $0x858] sm:$0xff]
    %v331 = vld [vmem:[#allocation3 + $0x860] sm:$0xff]
    %v332 = vld [vmem:[#allocation3 + $0x868] sm:$0xff]
    %v333 = vld [vmem:[#allocation3 + $0x870] sm:$0xff]
    %v334 = vld [vmem:[#allocation3 + $0x878] sm:$0xff]
    %v335 = vld [vmem:[#allocation3 + $0x880] sm:$0xff]
    %v336 = vld [vmem:[#allocation3 + $0x888] sm:$0xff]
    %v337 = vld [vmem:[#allocation3 + $0x890] sm:$0xff]
    %v338 = vld [vmem:[#allocation3 + $0x898] sm:$0xff]
    %v339 = vld [vmem:[#allocation3 + $0x8a0] sm:$0xff]
    %v340 = vld [vmem:[#allocation3 + $0x8a8] sm:$0xff]
    %v341 = vld [vmem:[#allocation3 + $0x8b0] sm:$0xff]
    %v342 = vld [vmem:[#allocation3 + $0x8b8] sm:$0xff]
    %v343 = vld [vmem:[#allocation3 + $0x8c0] sm:$0xff]
    %v344 = vld [vmem:[#allocation3 + $0x8c8] sm:$0xff]
    %v345 = vld [vmem:[#allocation3 + $0x8d0] sm:$0xff]
    %v346 = vld [vmem:[#allocation3 + $0x8d8] sm:$0xff]
    %v347 = vld [vmem:[#allocation3 + $0x8e0] sm:$0xff]
    %v348 = vld [vmem:[#allocation3 + $0x8e8] sm:$0xff]
    %v349 = vld [vmem:[#allocation3 + $0x8f0] sm:$0xff]
    %v350 = vld [vmem:[#allocation3 + $0x8f8] sm:$0xff]
    %v351 = vld [vmem:[#allocation3 + $0x900] sm:$0xff]
    %v352 = vld [vmem:[#allocation3 + $0x908] sm:$0xff]
    %v353 = vld [vmem:[#allocation3 + $0x910] sm:$0xff]
    %v354 = vld [vmem:[#allocation3 + $0x918] sm:$0xff]
    %v355 = vld [vmem:[#allocation3 + $0x920] sm:$0xff]
    %v356 = vld [vmem:[#allocation3 + $0x928] sm:$0xff]
    %v357 = vld [vmem:[#allocation3 + $0x930] sm:$0xff]
    %v358 = vld [vmem:[#allocation3 + $0x938] sm:$0xff]
    %v359 = vld [vmem:[#allocation3 + $0x940] sm:$0xff]
    %v360 = vld [vmem:[#allocation3 + $0x948] sm:$0xff]
    %v361 = vld [vmem:[#allocation3 + $0x950] sm:$0xff]
    %v362 = vld [vmem:[#allocation3 + $0x958] sm:$0xff]
    %v363 = vld [vmem:[#allocation3 + $0x960] sm:$0xff]
    %v364 = vld [vmem:[#allocation3 + $0x968] sm:$0xff]
    %v365 = vld [vmem:[#allocation3 + $0x970] sm:$0xff]
    %v366 = vld [vmem:[#allocation3 + $0x978] sm:$0xff]
    %v367 = vld [vmem:[#allocation3 + $0x980] sm:$0xff]
    %v368 = vld [vmem:[#allocation3 + $0x988] sm:$0xff]
    %v369 = vld [vmem:[#allocation3 + $0x990] sm:$0xff]
    %v370 = vld [vmem:[#allocation3 + $0x998] sm:$0xff]
    %v371 = vld [vmem:[#allocation3 + $0x9a0] sm:$0xff]
    %v372 = vld [vmem:[#allocation3 + $0x9a8] sm:$0xff]
    %v373 = vld [vmem:[#allocation3 + $0x9b0] sm:$0xff]
    %v374 = vld [vmem:[#allocation3 + $0x9b8] sm:$0xff]
    %v375 = vld [vmem:[#allocation3 + $0x9c0] sm:$0xff]
    %v376 = vld [vmem:[#allocation3 + $0x9c8] sm:$0xff]
    %v377 = vld [vmem:[#allocation3 + $0x9d0] sm:$0xff]
    %v378 = vld [vmem:[#allocation3 + $0x9d8] sm:$0xff]
    %v379 = vld [vmem:[#allocation3 + $0x9e0] sm:$0xff]
    %v380 = vld [vmem:[#allocation3 + $0x9e8] sm:$0xff]
    %v381 = vld [vmem:[#allocation3 + $0x9f0] sm:$0xff]
    %v382 = vld [vmem:[#allocation3 + $0x9f8] sm:$0xff]
    %v383 = vld [vmem:[#allocation3 + $0xa00] sm:$0xff]
    %v384 = vld [vmem:[#allocation3 + $0xa08] sm:$0xff]
    %v385 = vld [vmem:[#allocation3 + $0xa10] sm:$0xff]
    %v386 = vld [vmem:[#allocation3 + $0xa18] sm:$0xff]
    %v387 = vld [vmem:[#allocation3 + $0xa20] sm:$0xff]
    %v388 = vld [vmem:[#allocation3 + $0xa28] sm:$0xff]
    %v389 = vld [vmem:[#allocation3 + $0xa30] sm:$0xff]
    %v390 = vld [vmem:[#allocation3 + $0xa38] sm:$0xff]
    %v391 = vld [vmem:[#allocation3 + $0xa40] sm:$0xff]
    %v392 = vld [vmem:[#allocation3 + $0xa48] sm:$0xff]
    %v393 = vld [vmem:[#allocation3 + $0xa50] sm:$0xff]
    %v394 = vld [vmem:[#allocation3 + $0xa58] sm:$0xff]
    %v395 = vld [vmem:[#allocation3 + $0xa60] sm:$0xff]
    %v396 = vld [vmem:[#allocation3 + $0xa68] sm:$0xff]
    %v397 = vld [vmem:[#allocation3 + $0xa70] sm:$0xff]
    %v398 = vld [vmem:[#allocation3 + $0xa78] sm:$0xff]
    %v399 = vld [vmem:[#allocation3 + $0xa80] sm:$0xff]
    %v400 = vld [vmem:[#allocation3 + $0xa88] sm:$0xff]
    %v401 = vld [vmem:[#allocation3 + $0xa90] sm:$0xff]
    %v402 = vld [vmem:[#allocation3 + $0xa98] sm:$0xff]
    %v403 = vld [vmem:[#allocation3 + $0xaa0] sm:$0xff]
    %v404 = vld [vmem:[#allocation3 + $0xaa8] sm:$0xff]
    %v405 = vld [vmem:[#allocation3 + $0xab0] sm:$0xff]
    %v406 = vld [vmem:[#allocation3 + $0xab8] sm:$0xff]
    %v407 = vld [vmem:[#allocation3 + $0xac0] sm:$0xff]
    %v408 = vld [vmem:[#allocation3 + $0xac8] sm:$0xff]
    %v409 = vld [vmem:[#allocation3 + $0xad0] sm:$0xff]
    %v410 = vld [vmem:[#allocation3 + $0xad8] sm:$0xff]
    %v411 = vld [vmem:[#allocation3 + $0xae0] sm:$0xff]
    %v412 = vld [vmem:[#allocation3 + $0xae8] sm:$0xff]
    %v413 = vld [vmem:[#allocation3 + $0xaf0] sm:$0xff]
    %v414 = vld [vmem:[#allocation3 + $0xaf8] sm:$0xff]
    %v415 = vld [vmem:[#allocation3 + $0xb00] sm:$0xff]
    %v416 = vld [vmem:[#allocation3 + $0xb08] sm:$0xff]
    %v417 = vld [vmem:[#allocation3 + $0xb10] sm:$0xff]
    %v418 = vld [vmem:[#allocation3 + $0xb18] sm:$0xff]
    %v419 = vld [vmem:[#allocation3 + $0xb20] sm:$0xff]
    %v420 = vld [vmem:[#allocation3 + $0xb28] sm:$0xff]
    %v421 = vld [vmem:[#allocation3 + $0xb30] sm:$0xff]
    %v422 = vld [vmem:[#allocation3 + $0xb38] sm:$0xff]
    %v423 = vld [vmem:[#allocation3 + $0xb40] sm:$0xff]
    %v424 = vld [vmem:[#allocation3 + $0xb48] sm:$0xff]
    %v425 = vld [vmem:[#allocation3 + $0xb50] sm:$0xff]
    %v426 = vld [vmem:[#allocation3 + $0xb58] sm:$0xff]
    %v427 = vld [vmem:[#allocation3 + $0xb60] sm:$0xff]
    %v428 = vld [vmem:[#allocation3 + $0xb68] sm:$0xff]
    %v429 = vld [vmem:[#allocation3 + $0xb70] sm:$0xff]
    %v430 = vld [vmem:[#allocation3 + $0xb78] sm:$0xff]
    %v431 = vld [vmem:[#allocation3 + $0xb80] sm:$0xff]
    %v432 = vld [vmem:[#allocation3 + $0xb88] sm:$0xff]
    %v433 = vld [vmem:[#allocation3 + $0xb90] sm:$0xff]
    %v434 = vld [vmem:[#allocation3 + $0xb98] sm:$0xff]
    %v435 = vld [vmem:[#allocation3 + $0xba0] sm:$0xff]
    %v436 = vld [vmem:[#allocation3 + $0xba8] sm:$0xff]
    %v437 = vld [vmem:[#allocation3 + $0xbb0] sm:$0xff]
    %v438 = vld [vmem:[#allocation3 + $0xbb8] sm:$0xff]
    %v439 = vld [vmem:[#allocation3 + $0xbc0] sm:$0xff]
    %v440 = vld [vmem:[#allocation3 + $0xbc8] sm:$0xff]
    %v441 = vld [vmem:[#allocation3 + $0xbd0] sm:$0xff]
    %v442 = vld [vmem:[#allocation3 + $0xbd8] sm:$0xff]
    %v443 = vld [vmem:[#allocation3 + $0xbe0] sm:$0xff]
    %v444 = vld [vmem:[#allocation3 + $0xbe8] sm:$0xff]
    %v445 = vld [vmem:[#allocation3 + $0xbf0] sm:$0xff]
    %v446 = vld [vmem:[#allocation3 + $0xbf8] sm:$0xff]
    %v447 = vld [vmem:[#allocation3 + $0xc00] sm:$0xff]
    %v448 = vld [vmem:[#allocation3 + $0xc08] sm:$0xff]
    %v449 = vld [vmem:[#allocation3 + $0xc10] sm:$0xff]
    %v450 = vld [vmem:[#allocation3 + $0xc18] sm:$0xff]
    %v451 = vld [vmem:[#allocation3 + $0xc20] sm:$0xff]
    %v452 = vld [vmem:[#allocation3 + $0xc28] sm:$0xff]
    %v453 = vld [vmem:[#allocation3 + $0xc30] sm:$0xff]
    %v454 = vld [vmem:[#allocation3 + $0xc38] sm:$0xff]
    %v455 = vld [vmem:[#allocation3 + $0xc40] sm:$0xff]
    %v456 = vld [vmem:[#allocation3 + $0xc48] sm:$0xff]
    %v457 = vld [vmem:[#allocation3 + $0xc50] sm:$0xff]
    %v458 = vld [vmem:[#allocation3 + $0xc58] sm:$0xff]
    %v459 = vld [vmem:[#allocation3 + $0xc60] sm:$0xff]
    %v460 = vld [vmem:[#allocation3 + $0xc68] sm:$0xff]
    %v461 = vld [vmem:[#allocation3 + $0xc70] sm:$0xff]
    %v462 = vld [vmem:[#allocation3 + $0xc78] sm:$0xff]
    %v463 = vld [vmem:[#allocation3 + $0xc80] sm:$0xff]
    %v464 = vld [vmem:[#allocation3 + $0xc88] sm:$0xff]
    %v465 = vld [vmem:[#allocation3 + $0xc90] sm:$0xff]
    %v466 = vld [vmem:[#allocation3 + $0xc98] sm:$0xff]
    %v467 = vld [vmem:[#allocation3 + $0xca0] sm:$0xff]
    %v468 = vld [vmem:[#allocation3 + $0xca8] sm:$0xff]
    %v469 = vld [vmem:[#allocation3 + $0xcb0] sm:$0xff]
    %v470 = vld [vmem:[#allocation3 + $0xcb8] sm:$0xff]
    %v471 = vld [vmem:[#allocation3 + $0xcc0] sm:$0xff]
    %v472 = vld [vmem:[#allocation3 + $0xcc8] sm:$0xff]
    %v473 = vld [vmem:[#allocation3 + $0xcd0] sm:$0xff]
    %v474 = vld [vmem:[#allocation3 + $0xcd8] sm:$0xff]
    %v475 = vld [vmem:[#allocation3 + $0xce0] sm:$0xff]
    %v476 = vld [vmem:[#allocation3 + $0xce8] sm:$0xff]
    %v477 = vld [vmem:[#allocation3 + $0xcf0] sm:$0xff]
    %v478 = vld [vmem:[#allocation3 + $0xcf8] sm:$0xff]
    %v479 = vld [vmem:[#allocation3 + $0xd00] sm:$0xff]
    %v480 = vld [vmem:[#allocation3 + $0xd08] sm:$0xff]
    %v481 = vld [vmem:[#allocation3 + $0xd10] sm:$0xff]
    %v482 = vld [vmem:[#allocation3 + $0xd18] sm:$0xff]
    %v483 = vld [vmem:[#allocation3 + $0xd20] sm:$0xff]
    %v484 = vld [vmem:[#allocation3 + $0xd28] sm:$0xff]
    %v485 = vld [vmem:[#allocation3 + $0xd30] sm:$0xff]
    %v486 = vld [vmem:[#allocation3 + $0xd38] sm:$0xff]
    %v487 = vld [vmem:[#allocation3 + $0xd40] sm:$0xff]
    %v488 = vld [vmem:[#allocation3 + $0xd48] sm:$0xff]
    %v489 = vld [vmem:[#allocation3 + $0xd50] sm:$0xff]
    %v490 = vld [vmem:[#allocation3 + $0xd58] sm:$0xff]
    %v491 = vld [vmem:[#allocation3 + $0xd60] sm:$0xff]
    %v492 = vld [vmem:[#allocation3 + $0xd68] sm:$0xff]
    %v493 = vld [vmem:[#allocation3 + $0xd70] sm:$0xff]
    %v494 = vld [vmem:[#allocation3 + $0xd78] sm:$0xff]
    %v495 = vld [vmem:[#allocation3 + $0xd80] sm:$0xff]
    %v496 = vld [vmem:[#allocation3 + $0xd88] sm:$0xff]
    %v497 = vld [vmem:[#allocation3 + $0xd90] sm:$0xff]
    %v498 = vld [vmem:[#allocation3 + $0xd98] sm:$0xff]
    %v499 = vld [vmem:[#allocation3 + $0xda0] sm:$0xff]
    %v500 = vld [vmem:[#allocation3 + $0xda8] sm:$0xff]
    %v501 = vld [vmem:[#allocation3 + $0xdb0] sm:$0xff]
    %v502 = vld [vmem:[#allocation3 + $0xdb8] sm:$0xff]
    %v503 = vld [vmem:[#allocation3 + $0xdc0] sm:$0xff]
    %v504 = vld [vmem:[#allocation3 + $0xdc8] sm:$0xff]
    %v505 = vld [vmem:[#allocation3 + $0xdd0] sm:$0xff]
    %v506 = vld [vmem:[#allocation3 + $0xdd8] sm:$0xff]
    %v507 = vld [vmem:[#allocation3 + $0xde0] sm:$0xff]
    %v508 = vld [vmem:[#allocation3 + $0xde8] sm:$0xff]
    %v509 = vld [vmem:[#allocation3 + $0xdf0] sm:$0xff]
    %v510 = vld [vmem:[#allocation3 + $0xdf8] sm:$0xff]
    %v511 = vld [vmem:[#allocation3 + $0xe00] sm:$0xff]
    %v512 = vld [vmem:[#allocation3 + $0xe08] sm:$0xff]
    %v513 = vld [vmem:[#allocation3 + $0xe10] sm:$0xff]
    %v514 = vld [vmem:[#allocation3 + $0xe18] sm:$0xff]
    %v515 = vld [vmem:[#allocation3 + $0xe20] sm:$0xff]
    %v516 = vld [vmem:[#allocation3 + $0xe28] sm:$0xff]
    %v517 = vld [vmem:[#allocation3 + $0xe30] sm:$0xff]
    %v518 = vld [vmem:[#allocation3 + $0xe38] sm:$0xff]
    %v519 = vld [vmem:[#allocation3 + $0xe40] sm:$0xff]
    %v520 = vld [vmem:[#allocation3 + $0xe48] sm:$0xff]
    %v521 = vld [vmem:[#allocation3 + $0xe50] sm:$0xff]
    %v522 = vld [vmem:[#allocation3 + $0xe58] sm:$0xff]
    %v523 = vld [vmem:[#allocation3 + $0xe60] sm:$0xff]
    %v524 = vld [vmem:[#allocation3 + $0xe68] sm:$0xff]
    %v525 = vld [vmem:[#allocation3 + $0xe70] sm:$0xff]
    %v526 = vld [vmem:[#allocation3 + $0xe78] sm:$0xff]
    %v527 = vld [vmem:[#allocation3 + $0xe80] sm:$0xff]
    %v528 = vld [vmem:[#allocation3 + $0xe88] sm:$0xff]
    %v529 = vld [vmem:[#allocation3 + $0xe90] sm:$0xff]
    %v530 = vld [vmem:[#allocation3 + $0xe98] sm:$0xff]
    %v531 = vld [vmem:[#allocation3 + $0xea0] sm:$0xff]
    %v532 = vld [vmem:[#allocation3 + $0xea8] sm:$0xff]
    %v533 = vld [vmem:[#allocation3 + $0xeb0] sm:$0xff]
    %v534 = vld [vmem:[#allocation3 + $0xeb8] sm:$0xff]
    %v535 = vld [vmem:[#allocation3 + $0xec0] sm:$0xff]
    %v536 = vld [vmem:[#allocation3 + $0xec8] sm:$0xff]
    %v537 = vld [vmem:[#allocation3 + $0xed0] sm:$0xff]
    %v538 = vld [vmem:[#allocation3 + $0xed8] sm:$0xff]
    %v539 = vld [vmem:[#allocation3 + $0xee0] sm:$0xff]
    %v540 = vld [vmem:[#allocation3 + $0xee8] sm:$0xff]
    %v541 = vld [vmem:[#allocation3 + $0xef0] sm:$0xff]
    %v542 = vld [vmem:[#allocation3 + $0xef8] sm:$0xff]
    %v543 = vld [vmem:[#allocation3 + $0xf00] sm:$0xff]
    %v544 = vld [vmem:[#allocation3 + $0xf08] sm:$0xff]
    %v545 = vld [vmem:[#allocation3 + $0xf10] sm:$0xff]
    %v546 = vld [vmem:[#allocation3 + $0xf18] sm:$0xff]
    %v547 = vld [vmem:[#allocation3 + $0xf20] sm:$0xff]
    %v548 = vld [vmem:[#allocation3 + $0xf28] sm:$0xff]
    %v549 = vld [vmem:[#allocation3 + $0xf30] sm:$0xff]
    %v550 = vld [vmem:[#allocation3 + $0xf38] sm:$0xff]
    %v551 = vld [vmem:[#allocation3 + $0xf40] sm:$0xff]
    %v552 = vld [vmem:[#allocation3 + $0xf48] sm:$0xff]
    %v553 = vld [vmem:[#allocation3 + $0xf50] sm:$0xff]
    %v554 = vld [vmem:[#allocation3 + $0xf58] sm:$0xff]
    %v555 = vld [vmem:[#allocation3 + $0xf60] sm:$0xff]
    %v556 = vld [vmem:[#allocation3 + $0xf68] sm:$0xff]
    %v557 = vld [vmem:[#allocation3 + $0xf70] sm:$0xff]
    %v558 = vld [vmem:[#allocation3 + $0xf78] sm:$0xff]
    %v559 = vld [vmem:[#allocation3 + $0xf80] sm:$0xff]
    %v560 = vld [vmem:[#allocation3 + $0xf88] sm:$0xff]
    %v561 = vld [vmem:[#allocation3 + $0xf90] sm:$0xff]
    %v562 = vld [vmem:[#allocation3 + $0xf98] sm:$0xff]
    %v563 = vld [vmem:[#allocation3 + $0xfa0] sm:$0xff]
    %v564 = vld [vmem:[#allocation3 + $0xfa8] sm:$0xff]
    %v565 = vld [vmem:[#allocation3 + $0xfb0] sm:$0xff]
    %v566 = vld [vmem:[#allocation3 + $0xfb8] sm:$0xff]
    %v567 = vld [vmem:[#allocation3 + $0xfc0] sm:$0xff]
    %v568 = vld [vmem:[#allocation3 + $0xfc8] sm:$0xff]
    %v569 = vld [vmem:[#allocation3 + $0xfd0] sm:$0xff]
    %v570 = vld [vmem:[#allocation3 + $0xfd8] sm:$0xff]
    %v571 = vld [vmem:[#allocation3 + $0xfe0] sm:$0xff]
    %v572 = vld [vmem:[#allocation3 + $0xfe8] sm:$0xff]
    %v573 = vld [vmem:[#allocation3 + $0xff0] sm:$0xff]
    %v574 = vld [vmem:[#allocation3 + $0xff8] sm:$0xff]
    %v575 = vadd.f32 %v63, %v64
    %v576 = vadd.f32 %v575, %v65
    %v577 = vadd.f32 %v576, %v66
    %v578 = vadd.f32 %v577, %v67
    %v579 = vadd.f32 %v578, %v68
    %v580 = vadd.f32 %v579, %v69
    %v581 = vadd.f32 %v580, %v70
    %v582 = vadd.f32 %v581, %v71
    %v583 = vadd.f32 %v582, %v72
    %v584 = vadd.f32 %v583, %v73
    %v585 = vadd.f32 %v584, %v74
    %v586 = vadd.f32 %v585, %v75
    %v587 = vadd.f32 %v586, %v76
    %v588 = vadd.f32 %v587, %v77
    %v589 = vadd.f32 %v588, %v78
    %v590 = vadd.f32 %v589, %v79
    %v591 = vadd.f32 %v590, %v80
    %v592 = vadd.f32 %v591, %v81
    %v593 = vadd.f32 %v592, %v82
    %v594 = vadd.f32 %v593, %v83
    %v595 = vadd.f32 %v594, %v84
    %v596 = vadd.f32 %v595, %v85
    %v597 = vadd.f32 %v596, %v86
    %v598 = vadd.f32 %v597, %v87
    %v599 = vadd.f32 %v598, %v88
    %v600 = vadd.f32 %v599, %v89
    %v601 = vadd.f32 %v600, %v90
    %v602 = vadd.f32 %v601, %v91
    %v603 = vadd.f32 %v602, %v92
    %v604 = vadd.f32 %v603, %v93
    %v605 = vadd.f32 %v604, %v94
    %v606 = vadd.f32 %v605, %v95
    %v607 = vadd.f32 %v606, %v96
    %v608 = vadd.f32 %v607, %v97
    %v609 = vadd.f32 %v608, %v98
    %v610 = vadd.f32 %v609, %v99
    %v611 = vadd.f32 %v610, %v100
    %v612 = vadd.f32 %v611, %v101
    %v613 = vadd.f32 %v612, %v102
    %v614 = vadd.f32 %v613, %v103
    %v615 = vadd.f32 %v614, %v104
    %v616 = vadd.f32 %v615, %v105
    %v617 = vadd.f32 %v616, %v106
    %v618 = vadd.f32 %v617, %v107
    %v619 = vadd.f32 %v618, %v108
    %v620 = vadd.f32 %v619, %v109
    %v621 = vadd.f32 %v620, %v110
    %v622 = vadd.f32 %v621, %v111
    %v623 = vadd.f32 %v622, %v112
    %v624 = vadd.f32 %v623, %v113
    %v625 = vadd.f32 %v624, %v114
    %v626 = vadd.f32 %v625, %v115
    %v627 = vadd.f32 %v626, %v116
    %v628 = vadd.f32 %v627, %v117
    %v629 = vadd.f32 %v628, %v118
    %v630 = vadd.f32 %v629, %v119
    %v631 = vadd.f32 %v630, %v120
    %v632 = vadd.f32 %v631, %v121
    %v633 = vadd.f32 %v632, %v122
    %v634 = vadd.f32 %v633, %v123
    %v635 = vadd.f32 %v634, %v124
    %v636 = vadd.f32 %v635, %v125
    %v637 = vadd.f32 %v636, %v126
    %v638 = vadd.f32 %v637, %v127
    %v639 = vadd.f32 %v638, %v128
    %v640 = vadd.f32 %v639, %v129
    %v641 = vadd.f32 %v640, %v130
    %v642 = vadd.f32 %v641, %v131
    %v643 = vadd.f32 %v642, %v132
    %v644 = vadd.f32 %v643, %v133
    %v645 = vadd.f32 %v644, %v134
    %v646 = vadd.f32 %v645, %v135
    %v647 = vadd.f32 %v646, %v136
    %v648 = vadd.f32 %v647, %v137
    %v649 = vadd.f32 %v648, %v138
    %v650 = vadd.f32 %v649, %v139
    %v651 = vadd.f32 %v650, %v140
    %v652 = vadd.f32 %v651, %v141
    %v653 = vadd.f32 %v652, %v142
    %v654 = vadd.f32 %v653, %v143
    %v655 = vadd.f32 %v654, %v144
    %v656 = vadd.f32 %v655, %v145
    %v657 = vadd.f32 %v656, %v146
    %v658 = vadd.f32 %v657, %v147
    %v659 = vadd.f32 %v658, %v148
    %v660 = vadd.f32 %v659, %v149
    %v661 = vadd.f32 %v660, %v150
    %v662 = vadd.f32 %v661, %v151
    %v663 = vadd.f32 %v662, %v152
    %v664 = vadd.f32 %v663, %v153
    %v665 = vadd.f32 %v664, %v154
    %v666 = vadd.f32 %v665, %v155
    %v667 = vadd.f32 %v666, %v156
    %v668 = vadd.f32 %v667, %v157
    %v669 = vadd.f32 %v668, %v158
    %v670 = vadd.f32 %v669, %v159
    %v671 = vadd.f32 %v670, %v160
    %v672 = vadd.f32 %v671, %v161
    %v673 = vadd.f32 %v672, %v162
    %v674 = vadd.f32 %v673, %v163
    %v675 = vadd.f32 %v674, %v164
    %v676 = vadd.f32 %v675, %v165
    %v677 = vadd.f32 %v676, %v166
    %v678 = vadd.f32 %v677, %v167
    %v679 = vadd.f32 %v678, %v168
    %v680 = vadd.f32 %v679, %v169
    %v681 = vadd.f32 %v680, %v170
    %v682 = vadd.f32 %v681, %v171
    %v683 = vadd.f32 %v682, %v172
    %v684 = vadd.f32 %v683, %v173
    %v685 = vadd.f32 %v684, %v174
    %v686 = vadd.f32 %v685, %v175
    %v687 = vadd.f32 %v686, %v176
    %v688 = vadd.f32 %v687, %v177
    %v689 = vadd.f32 %v688, %v178
    %v690 = vadd.f32 %v689, %v179
    %v691 = vadd.f32 %v690, %v180
    %v692 = vadd.f32 %v691, %v181
    %v693 = vadd.f32 %v692, %v182
    %v694 = vadd.f32 %v693, %v183
    %v695 = vadd.f32 %v694, %v184
    %v696 = vadd.f32 %v695, %v185
    %v697 = vadd.f32 %v696, %v186
    %v698 = vadd.f32 %v697, %v187
    %v699 = vadd.f32 %v698, %v188
    %v700 = vadd.f32 %v699, %v189
    %v701 = vadd.f32 %v700, %v190
    %702 = vadd.xlane.f32.xlu0 %v701
    %v703 = vpop.xlane.xlu0 %702
    %v704 = vadd.f32 %v191, %v192
    %v705 = vadd.f32 %v704, %v193
    %v706 = vadd.f32 %v705, %v194
    %v707 = vadd.f32 %v706, %v195
    %v708 = vadd.f32 %v707, %v196
    %v709 = vadd.f32 %v708, %v197
    %v710 = vadd.f32 %v709, %v198
    %v711 = vadd.f32 %v710, %v199
    %v712 = vadd.f32 %v711, %v200
    %v713 = vadd.f32 %v712, %v201
    %v714 = vadd.f32 %v713, %v202
    %v715 = vadd.f32 %v714, %v203
    %v716 = vadd.f32 %v715, %v204
    %v717 = vadd.f32 %v716, %v205
    %v718 = vadd.f32 %v717, %v206
    %v719 = vadd.f32 %v718, %v207
    %v720 = vadd.f32 %v719, %v208
    %v721 = vadd.f32 %v720, %v209
    %v722 = vadd.f32 %v721, %v210
    %v723 = vadd.f32 %v722, %v211
    %v724 = vadd.f32 %v723, %v212
    %v725 = vadd.f32 %v724, %v213
    %v726 = vadd.f32 %v725, %v214
    %v727 = vadd.f32 %v726, %v215
    %v728 = vadd.f32 %v727, %v216
    %v729 = vadd.f32 %v728, %v217
    %v730 = vadd.f32 %v729, %v218
    %v731 = vadd.f32 %v730, %v219
    %v732 = vadd.f32 %v731, %v220
    %v733 = vadd.f32 %v732, %v221
    %v734 = vadd.f32 %v733, %v222
    %v735 = vadd.f32 %v734, %v223
    %v736 = vadd.f32 %v735, %v224
    %v737 = vadd.f32 %v736, %v225
    %v738 = vadd.f32 %v737, %v226
    %v739 = vadd.f32 %v738, %v227
    %v740 = vadd.f32 %v739, %v228
    %v741 = vadd.f32 %v740, %v229
    %v742 = vadd.f32 %v741, %v230
    %v743 = vadd.f32 %v742, %v231
    %v744 = vadd.f32 %v743, %v232
    %v745 = vadd.f32 %v744, %v233
    %v746 = vadd.f32 %v745, %v234
    %v747 = vadd.f32 %v746, %v235
    %v748 = vadd.f32 %v747, %v236
    %v749 = vadd.f32 %v748, %v237
    %v750 = vadd.f32 %v749, %v238
    %v751 = vadd.f32 %v750, %v239
    %v752 = vadd.f32 %v751, %v240
    %v753 = vadd.f32 %v752, %v241
    %v754 = vadd.f32 %v753, %v242
    %v755 = vadd.f32 %v754, %v243
    %v756 = vadd.f32 %v755, %v244
    %v757 = vadd.f32 %v756, %v245
    %v758 = vadd.f32 %v757, %v246
    %v759 = vadd.f32 %v758, %v247
    %v760 = vadd.f32 %v759, %v248
    %v761 = vadd.f32 %v760, %v249
    %v762 = vadd.f32 %v761, %v250
    %v763 = vadd.f32 %v762, %v251
    %v764 = vadd.f32 %v763, %v252
    %v765 = vadd.f32 %v764, %v253
    %v766 = vadd.f32 %v765, %v254
    %v767 = vadd.f32 %v766, %v255
    %v768 = vadd.f32 %v767, %v256
    %v769 = vadd.f32 %v768, %v257
    %v770 = vadd.f32 %v769, %v258
    %v771 = vadd.f32 %v770, %v259
    %v772 = vadd.f32 %v771, %v260
    %v773 = vadd.f32 %v772, %v261
    %v774 = vadd.f32 %v773, %v262
    %v775 = vadd.f32 %v774, %v263
    %v776 = vadd.f32 %v775, %v264
    %v777 = vadd.f32 %v776, %v265
    %v778 = vadd.f32 %v777, %v266
    %v779 = vadd.f32 %v778, %v267
    %v780 = vadd.f32 %v779, %v268
    %v781 = vadd.f32 %v780, %v269
    %v782 = vadd.f32 %v781, %v270
    %v783 = vadd.f32 %v782, %v271
    %v784 = vadd.f32 %v783, %v272
    %v785 = vadd.f32 %v784, %v273
    %v786 = vadd.f32 %v785, %v274
    %v787 = vadd.f32 %v786, %v275
    %v788 = vadd.f32 %v787, %v276
    %v789 = vadd.f32 %v788, %v277
    %v790 = vadd.f32 %v789, %v278
    %v791 = vadd.f32 %v790, %v279
    %v792 = vadd.f32 %v791, %v280
    %v793 = vadd.f32 %v792, %v281
    %v794 = vadd.f32 %v793, %v282
    %v795 = vadd.f32 %v794, %v283
    %v796 = vadd.f32 %v795, %v284
    %v797 = vadd.f32 %v796, %v285
    %v798 = vadd.f32 %v797, %v286
    %v799 = vadd.f32 %v798, %v287
    %v800 = vadd.f32 %v799, %v288
    %v801 = vadd.f32 %v800, %v289
    %v802 = vadd.f32 %v801, %v290
    %v803 = vadd.f32 %v802, %v291
    %v804 = vadd.f32 %v803, %v292
    %v805 = vadd.f32 %v804, %v293
    %v806 = vadd.f32 %v805, %v294
    %v807 = vadd.f32 %v806, %v295
    %v808 = vadd.f32 %v807, %v296
    %v809 = vadd.f32 %v808, %v297
    %v810 = vadd.f32 %v809, %v298
    %v811 = vadd.f32 %v810, %v299
    %v812 = vadd.f32 %v811, %v300
    %v813 = vadd.f32 %v812, %v301
    %v814 = vadd.f32 %v813, %v302
    %v815 = vadd.f32 %v814, %v303
    %v816 = vadd.f32 %v815, %v304
    %v817 = vadd.f32 %v816, %v305
    %v818 = vadd.f32 %v817, %v306
    %v819 = vadd.f32 %v818, %v307
    %v820 = vadd.f32 %v819, %v308
    %v821 = vadd.f32 %v820, %v309
    %v822 = vadd.f32 %v821, %v310
    %v823 = vadd.f32 %v822, %v311
    %v824 = vadd.f32 %v823, %v312
    %v825 = vadd.f32 %v824, %v313
    %v826 = vadd.f32 %v825, %v314
    %v827 = vadd.f32 %v826, %v315
    %v828 = vadd.f32 %v827, %v316
    %v829 = vadd.f32 %v828, %v317
    %v830 = vadd.f32 %v829, %v318
    %831 = vadd.xlane.f32.xlu0 %v830
    %v832 = vpop.xlane.xlu0 %831
    %v833 = vadd.f32 %v319, %v320
    %v834 = vadd.f32 %v833, %v321
    %v835 = vadd.f32 %v834, %v322
    %v836 = vadd.f32 %v835, %v323
    %v837 = vadd.f32 %v836, %v324
    %v838 = vadd.f32 %v837, %v325
    %v839 = vadd.f32 %v838, %v326
    %v840 = vadd.f32 %v839, %v327
    %v841 = vadd.f32 %v840, %v328
    %v842 = vadd.f32 %v841, %v329
    %v843 = vadd.f32 %v842, %v330
    %v844 = vadd.f32 %v843, %v331
    %v845 = vadd.f32 %v844, %v332
    %v846 = vadd.f32 %v845, %v333
    %v847 = vadd.f32 %v846, %v334
    %v848 = vadd.f32 %v847, %v335
    %v849 = vadd.f32 %v848, %v336
    %v850 = vadd.f32 %v849, %v337
    %v851 = vadd.f32 %v850, %v338
    %v852 = vadd.f32 %v851, %v339
    %v853 = vadd.f32 %v852, %v340
    %v854 = vadd.f32 %v853, %v341
    %v855 = vadd.f32 %v854, %v342
    %v856 = vadd.f32 %v855, %v343
    %v857 = vadd.f32 %v856, %v344
    %v858 = vadd.f32 %v857, %v345
    %v859 = vadd.f32 %v858, %v346
    %v860 = vadd.f32 %v859, %v347
    %v861 = vadd.f32 %v860, %v348
    %v862 = vadd.f32 %v861, %v349
    %v863 = vadd.f32 %v862, %v350
    %v864 = vadd.f32 %v863, %v351
    %v865 = vadd.f32 %v864, %v352
    %v866 = vadd.f32 %v865, %v353
    %v867 = vadd.f32 %v866, %v354
    %v868 = vadd.f32 %v867, %v355
    %v869 = vadd.f32 %v868, %v356
    %v870 = vadd.f32 %v869, %v357
    %v871 = vadd.f32 %v870, %v358
    %v872 = vadd.f32 %v871, %v359
    %v873 = vadd.f32 %v872, %v360
    %v874 = vadd.f32 %v873, %v361
    %v875 = vadd.f32 %v874, %v362
    %v876 = vadd.f32 %v875, %v363
    %v877 = vadd.f32 %v876, %v364
    %v878 = vadd.f32 %v877, %v365
    %v879 = vadd.f32 %v878, %v366
    %v880 = vadd.f32 %v879, %v367
    %v881 = vadd.f32 %v880, %v368
    %v882 = vadd.f32 %v881, %v369
    %v883 = vadd.f32 %v882, %v370
    %v884 = vadd.f32 %v883, %v371
    %v885 = vadd.f32 %v884, %v372
    %v886 = vadd.f32 %v885, %v373
    %v887 = vadd.f32 %v886, %v374
    %v888 = vadd.f32 %v887, %v375
    %v889 = vadd.f32 %v888, %v376
    %v890 = vadd.f32 %v889, %v377
    %v891 = vadd.f32 %v890, %v378
    %v892 = vadd.f32 %v891, %v379
    %v893 = vadd.f32 %v892, %v380
    %v894 = vadd.f32 %v893, %v381
    %v895 = vadd.f32 %v894, %v382
    %v896 = vadd.f32 %v895, %v383
    %v897 = vadd.f32 %v896, %v384
    %v898 = vadd.f32 %v897, %v385
    %v899 = vadd.f32 %v898, %v386
    %v900 = vadd.f32 %v899, %v387
    %v901 = vadd.f32 %v900, %v388
    %v902 = vadd.f32 %v901, %v389
    %v903 = vadd.f32 %v902, %v390
    %v904 = vadd.f32 %v903, %v391
    %v905 = vadd.f32 %v904, %v392
    %v906 = vadd.f32 %v905, %v393
    %v907 = vadd.f32 %v906, %v394
    %v908 = vadd.f32 %v907, %v395
    %v909 = vadd.f32 %v908, %v396
    %v910 = vadd.f32 %v909, %v397
    %v911 = vadd.f32 %v910, %v398
    %v912 = vadd.f32 %v911, %v399
    %v913 = vadd.f32 %v912, %v400
    %v914 = vadd.f32 %v913, %v401
    %v915 = vadd.f32 %v914, %v402
    %v916 = vadd.f32 %v915, %v403
    %v917 = vadd.f32 %v916, %v404
    %v918 = vadd.f32 %v917, %v405
    %v919 = vadd.f32 %v918, %v406
    %v920 = vadd.f32 %v919, %v407
    %v921 = vadd.f32 %v920, %v408
    %v922 = vadd.f32 %v921, %v409
    %v923 = vadd.f32 %v922, %v410
    %v924 = vadd.f32 %v923, %v411
    %v925 = vadd.f32 %v924, %v412
    %v926 = vadd.f32 %v925, %v413
    %v927 = vadd.f32 %v926, %v414
    %v928 = vadd.f32 %v927, %v415
    %v929 = vadd.f32 %v928, %v416
    %v930 = vadd.f32 %v929, %v417
    %v931 = vadd.f32 %v930, %v418
    %v932 = vadd.f32 %v931, %v419
    %v933 = vadd.f32 %v932, %v420
    %v934 = vadd.f32 %v933, %v421
    %v935 = vadd.f32 %v934, %v422
    %v936 = vadd.f32 %v935, %v423
    %v937 = vadd.f32 %v936, %v424
    %v938 = vadd.f32 %v937, %v425
    %v939 = vadd.f32 %v938, %v426
    %v940 = vadd.f32 %v939, %v427
    %v941 = vadd.f32 %v940, %v428
    %v942 = vadd.f32 %v941, %v429
    %v943 = vadd.f32 %v942, %v430
    %v944 = vadd.f32 %v943, %v431
    %v945 = vadd.f32 %v944, %v432
    %v946 = vadd.f32 %v945, %v433
    %v947 = vadd.f32 %v946, %v434
    %v948 = vadd.f32 %v947, %v435
    %v949 = vadd.f32 %v948, %v436
    %v950 = vadd.f32 %v949, %v437
    %v951 = vadd.f32 %v950, %v438
    %v952 = vadd.f32 %v951, %v439
    %v953 = vadd.f32 %v952, %v440
    %v954 = vadd.f32 %v953, %v441
    %v955 = vadd.f32 %v954, %v442
    %v956 = vadd.f32 %v955, %v443
    %v957 = vadd.f32 %v956, %v444
    %v958 = vadd.f32 %v957, %v445
    %v959 = vadd.f32 %v958, %v446
    %960 = vadd.xlane.f32.xlu0 %v959
    %v961 = vpop.xlane.xlu0 %960
    %v962 = vadd.f32 %v447, %v448
    %v963 = vadd.f32 %v962, %v449
    %v964 = vadd.f32 %v963, %v450
    %v965 = vadd.f32 %v964, %v451
    %v966 = vadd.f32 %v965, %v452
    %v967 = vadd.f32 %v966, %v453
    %v968 = vadd.f32 %v967, %v454
    %v969 = vadd.f32 %v968, %v455
    %v970 = vadd.f32 %v969, %v456
    %v971 = vadd.f32 %v970, %v457
    %v972 = vadd.f32 %v971, %v458
    %v973 = vadd.f32 %v972, %v459
    %v974 = vadd.f32 %v973, %v460
    %v975 = vadd.f32 %v974, %v461
    %v976 = vadd.f32 %v975, %v462
    %v977 = vadd.f32 %v976, %v463
    %v978 = vadd.f32 %v977, %v464
    %v979 = vadd.f32 %v978, %v465
    %v980 = vadd.f32 %v979, %v466
    %v981 = vadd.f32 %v980, %v467
    %v982 = vadd.f32 %v981, %v468
    %v983 = vadd.f32 %v982, %v469
    %v984 = vadd.f32 %v983, %v470
    %v985 = vadd.f32 %v984, %v471
    %v986 = vadd.f32 %v985, %v472
    %v987 = vadd.f32 %v986, %v473
    %v988 = vadd.f32 %v987, %v474
    %v989 = vadd.f32 %v988, %v475
    %v990 = vadd.f32 %v989, %v476
    %v991 = vadd.f32 %v990, %v477
    %v992 = vadd.f32 %v991, %v478
    %v993 = vadd.f32 %v992, %v479
    %v994 = vadd.f32 %v993, %v480
    %v995 = vadd.f32 %v994, %v481
    %v996 = vadd.f32 %v995, %v482
    %v997 = vadd.f32 %v996, %v483
    %v998 = vadd.f32 %v997, %v484
    %v999 = vadd.f32 %v998, %v485
    %v1000 = vadd.f32 %v999, %v486
    %v1001 = vadd.f32 %v1000, %v487
    %v1002 = vadd.f32 %v1001, %v488
    %v1003 = vadd.f32 %v1002, %v489
    %v1004 = vadd.f32 %v1003, %v490
    %v1005 = vadd.f32 %v1004, %v491
    %v1006 = vadd.f32 %v1005, %v492
    %v1007 = vadd.f32 %v1006, %v493
    %v1008 = vadd.f32 %v1007, %v494
    %v1009 = vadd.f32 %v1008, %v495
    %v1010 = vadd.f32 %v1009, %v496
    %v1011 = vadd.f32 %v1010, %v497
    %v1012 = vadd.f32 %v1011, %v498
    %v1013 = vadd.f32 %v1012, %v499
    %v1014 = vadd.f32 %v1013, %v500
    %v1015 = vadd.f32 %v1014, %v501
    %v1016 = vadd.f32 %v1015, %v502
    %v1017 = vadd.f32 %v1016, %v503
    %v1018 = vadd.f32 %v1017, %v504
    %v1019 = vadd.f32 %v1018, %v505
    %v1020 = vadd.f32 %v1019, %v506
    %v1021 = vadd.f32 %v1020, %v507
    %v1022 = vadd.f32 %v1021, %v508
    %v1023 = vadd.f32 %v1022, %v509
    %v1024 = vadd.f32 %v1023, %v510
    %v1025 = vadd.f32 %v1024, %v511
    %v1026 = vadd.f32 %v1025, %v512
    %v1027 = vadd.f32 %v1026, %v513
    %v1028 = vadd.f32 %v1027, %v514
    %v1029 = vadd.f32 %v1028, %v515
    %v1030 = vadd.f32 %v1029, %v516
    %v1031 = vadd.f32 %v1030, %v517
    %v1032 = vadd.f32 %v1031, %v518
    %v1033 = vadd.f32 %v1032, %v519
    %v1034 = vadd.f32 %v1033, %v520
    %v1035 = vadd.f32 %v1034, %v521
    %v1036 = vadd.f32 %v1035, %v522
    %v1037 = vadd.f32 %v1036, %v523
    %v1038 = vadd.f32 %v1037, %v524
    %v1039 = vadd.f32 %v1038, %v525
    %v1040 = vadd.f32 %v1039, %v526
    %v1041 = vadd.f32 %v1040, %v527
    %v1042 = vadd.f32 %v1041, %v528
    %v1043 = vadd.f32 %v1042, %v529
    %v1044 = vadd.f32 %v1043, %v530
    %v1045 = vadd.f32 %v1044, %v531
    %v1046 = vadd.f32 %v1045, %v532
    %v1047 = vadd.f32 %v1046, %v533
    %v1048 = vadd.f32 %v1047, %v534
    %v1049 = vadd.f32 %v1048, %v535
    %v1050 = vadd.f32 %v1049, %v536
    %v1051 = vadd.f32 %v1050, %v537
    %v1052 = vadd.f32 %v1051, %v538
    %v1053 = vadd.f32 %v1052, %v539
    %v1054 = vadd.f32 %v1053, %v540
    %v1055 = vadd.f32 %v1054, %v541
    %v1056 = vadd.f32 %v1055, %v542
    %v1057 = vadd.f32 %v1056, %v543
    %v1058 = vadd.f32 %v1057, %v544
    %v1059 = vadd.f32 %v1058, %v545
    %v1060 = vadd.f32 %v1059, %v546
    %v1061 = vadd.f32 %v1060, %v547
    %v1062 = vadd.f32 %v1061, %v548
    %v1063 = vadd.f32 %v1062, %v549
    %v1064 = vadd.f32 %v1063, %v550
    %v1065 = vadd.f32 %v1064, %v551
    %v1066 = vadd.f32 %v1065, %v552
    %v1067 = vadd.f32 %v1066, %v553
    %v1068 = vadd.f32 %v1067, %v554
    %v1069 = vadd.f32 %v1068, %v555
    %v1070 = vadd.f32 %v1069, %v556
    %v1071 = vadd.f32 %v1070, %v557
    %v1072 = vadd.f32 %v1071, %v558
    %v1073 = vadd.f32 %v1072, %v559
    %v1074 = vadd.f32 %v1073, %v560
    %v1075 = vadd.f32 %v1074, %v561
    %v1076 = vadd.f32 %v1075, %v562
    %v1077 = vadd.f32 %v1076, %v563
    %v1078 = vadd.f32 %v1077, %v564
    %v1079 = vadd.f32 %v1078, %v565
    %v1080 = vadd.f32 %v1079, %v566
    %v1081 = vadd.f32 %v1080, %v567
    %v1082 = vadd.f32 %v1081, %v568
    %v1083 = vadd.f32 %v1082, %v569
    %v1084 = vadd.f32 %v1083, %v570
    %v1085 = vadd.f32 %v1084, %v571
    %v1086 = vadd.f32 %v1085, %v572
    %v1087 = vadd.f32 %v1086, %v573
    %v1088 = vadd.f32 %v1087, %v574
    %1089 = vadd.xlane.f32.xlu0 %v1088
    %v1090 = vpop.xlane.xlu0 %1089
    %v1095 = vlaneseq
    %v1096 = vand.u32 %v1095, 127
    %v1097 = vlaneseq
    %v1098 = vshrl.u32 %v1097, 7
    %v1099 = vsub.s32 %v1096, %v1098
    %v1100 = vrot.slane %v703, %v1099
    %v1101 = vadd.s32 %v1096, 4294967288
    %v1102 = vlaneseq
    %v1103 = vshrl.u32 %v1102, 7
    %v1104 = vsub.s32 %v1101, %v1103
    %v1105 = vrot.slane %v832, %v1104
    %vm1106 = vcmask 130112
    %v1107 = vsel %vm1106, %v1105, %v1100
    %v1108 = vlaneseq
    %v1109 = vshrl.u32 %v1108, 7
    %v1110 = vsub.s32 %v1096, %v1109
    %v1111 = vrot.slane %v961, %v1110
    %v1112 = vlaneseq
    %v1113 = vshrl.u32 %v1112, 7
    %v1114 = vsub.s32 %v1101, %v1113
    %v1115 = vrot.slane %v1090, %v1114
    %v1116 = vsel %vm1106, %v1115, %v1111
    %vm1117 = vcmask 1041409
    %v1118 = vsel %vm1117, %v1116, %v1107
    %v1120 = vadd.f32 %v62, %v1118
    %vm1121 = vcmask 123904
    %1122 = vst.msk [vmem:[#allocation2] sm:$0x3] %vm1121, %v1120
    // Predicated region
    $region34: #{tpu_custom_call.1} parent=1 // pred_check
      %p1123 = pneg %p56
    $region35: #{tpu_custom_call.1} parent=1 // pred_check_branch
      %1125 = sbr.rel (%p1123) target = $region37
    $region36: #{tpu_custom_call.1} parent=1 // pred_region
      %v1126 = vld [vmem:[#allocation2] sm:$0x3]
      %v1127 = vmul.f32 %v1126, 6.1035156e-05
      %v1128 = vld [vmem:[#allocation5] sm:$0xff]
      %v1129 = vld [vmem:[#allocation5 + $0x8] sm:$0xff]
      %v1130 = vld [vmem:[#allocation7] sm:$0x1]
      %v1132 = vlaneseq
      %v1133 = vshrl.u32 %v1132, 7
      %v1134 = vsub.s32 0, %v1133
      %v1135 = vrot.slane %v1130, %v1134
      %vm1137 = vcmask 130048
      %v1139 = vsel %vm1137, %v1127, 0
      %1141 = vmatprep.subr.mxu0 0.0
      %1142 = vmatpush1.msra.mxu0 0.0
      %1143 = vmatprep.subr.mxu0 0.0
      %1144 = vmatpush1.msra.mxu0 0.0
      %1145 = vmatprep.subr.mxu0 0.0
      %1146 = vmatpush1.msra.mxu0 0.0
      %1147 = vmatprep.subr.mxu0 0.0
      %1148 = vmatpush1.msra.mxu0 0.0
      %1149 = vmatprep.subr.mxu0 0.0
      %1150 = vmatpush1.msra.mxu0 0.0
      %1151 = vmatprep.subr.mxu0 0.0
      %1152 = vmatpush1.msra.mxu0 0.0
      %1153 = vmatprep.subr.mxu0 0.0
      %1154 = vmatpush1.msra.mxu0 0.0
      %1155 = vmatprep.subr.mxu0 0.0
      %1156 = vmatpush1.msra.mxu0 0.0
      %1157 = vmatprep.subr.mxu0 0.0
      %1158 = vmatpush1.msra.mxu0 0.0
      %1159 = vmatprep.subr.mxu0 0.0
      %1160 = vmatpush1.msra.mxu0 0.0
      %1161 = vmatprep.subr.mxu0 0.0
      %1162 = vmatpush1.msra.mxu0 0.0
      %1163 = vmatprep.subr.mxu0 0.0
      %1164 = vmatpush1.msra.mxu0 0.0
      %1165 = vmatprep.subr.mxu0 0.0
      %1166 = vmatpush1.msra.mxu0 0.0
      %1167 = vmatprep.subr.mxu0 0.0
      %1168 = vmatpush1.msra.mxu0 0.0
      %1169 = vmatprep.subr.mxu0 0.0
      %1170 = vmatpush1.msra.mxu0 %v1129
      %1171 = vmatprep.subr.mxu0 0.0
      %1172 = vmatpush1.msra.mxu0 %v1128
      %1173 = vmatprep.subr.mxu0 0.0
      %1174 = vmatpush2.msra.mxu0 0.0
      %1175 = vmatprep.subr.mxu0 0.0
      %1176 = vmatpush2.msra.mxu0 0.0
      %1177 = vmatprep.subr.mxu0 0.0
      %1178 = vmatpush2.msra.mxu0 0.0
      %1179 = vmatprep.subr.mxu0 0.0
      %1180 = vmatpush2.msra.mxu0 0.0
      %1181 = vmatprep.subr.mxu0 0.0
      %1182 = vmatpush2.msra.mxu0 0.0
      %1183 = vmatprep.subr.mxu0 0.0
      %1184 = vmatpush2.msra.mxu0 0.0
      %1185 = vmatprep.subr.mxu0 0.0
      %1186 = vmatpush2.msra.mxu0 0.0
      %1187 = vmatprep.subr.mxu0 0.0
      %1188 = vmatpush2.msra.mxu0 0.0
      %1189 = vmatprep.subr.mxu0 0.0
      %1190 = vmatpush2.msra.mxu0 0.0
      %1191 = vmatprep.subr.mxu0 0.0
      %1192 = vmatpush2.msra.mxu0 0.0
      %1193 = vmatprep.subr.mxu0 0.0
      %1194 = vmatpush2.msra.mxu0 0.0
      %1195 = vmatprep.subr.mxu0 0.0
      %1196 = vmatpush2.msra.mxu0 0.0
      %1197 = vmatprep.subr.mxu0 0.0
      %1198 = vmatpush2.msra.mxu0 0.0
      %1199 = vmatprep.subr.mxu0 0.0
      %1200 = vmatpush2.msra.mxu0 0.0
      %1201 = vmatprep.subr.mxu0 0.0
      %1202 = vmatpush2.msra.mxu0 0.0
      %1203 = vmatprep.subr.mxu0 0.0
      %1204 = vmatpush2.msra.mxu0 0.0
      %1205 = vmatprep.mubr.f32.mxu0 0.0
      %1206 = vmatmul.mubr.f32.gmra.mxu0 %v1139
      %v1207 = vpop.f32.mrf.mxu0
      %v1208 = vadd.f32 %v1135, %v1207
      %v1209 = vpop.f32.mrf.mxu0
      %1210 = vdwg.mxu0
      %v1211 = vmax.f32 %v1208, 0.0
      %v1212 = vld [vmem:[%s3] sm:$0xff]
      %v1213 = vld [vmem:[%s3 + $0x8] sm:$0xff]
      %v1214 = vld [vmem:[%s3 + $0x10] sm:$0xff]
      %v1215 = vld [vmem:[%s3 + $0x18] sm:$0xff]
      %vm1216 = vcmask 261120
      %v1218 = vsel %vm1216, %v1211, 0
      %1220 = vmatprep.subr.mxu0 0.0
      %1221 = vmatpush1.msra.mxu0 0.0
      %1222 = vmatprep.subr.mxu0 0.0
      %1223 = vmatpush1.msra.mxu0 0.0
      %1224 = vmatprep.subr.mxu0 0.0
      %1225 = vmatpush1.msra.mxu0 0.0
      %1226 = vmatprep.subr.mxu0 0.0
      %1227 = vmatpush1.msra.mxu0 0.0
      %1228 = vmatprep.subr.mxu0 0.0
      %1229 = vmatpush1.msra.mxu0 0.0
      %1230 = vmatprep.subr.mxu0 0.0
      %1231 = vmatpush1.msra.mxu0 0.0
      %1232 = vmatprep.subr.mxu0 0.0
      %1233 = vmatpush1.msra.mxu0 0.0
      %1234 = vmatprep.subr.mxu0 0.0
      %1235 = vmatpush1.msra.mxu0 0.0
      %1236 = vmatprep.subr.mxu0 0.0
      %1237 = vmatpush1.msra.mxu0 0.0
      %1238 = vmatprep.subr.mxu0 0.0
      %1239 = vmatpush1.msra.mxu0 0.0
      %1240 = vmatprep.subr.mxu0 0.0
      %1241 = vmatpush1.msra.mxu0 0.0
      %1242 = vmatprep.subr.mxu0 0.0
      %1243 = vmatpush1.msra.mxu0 0.0
      %1244 = vmatprep.subr.mxu0 0.0
      %1245 = vmatpush1.msra.mxu0 %v1215
      %1246 = vmatprep.subr.mxu0 0.0
      %1247 = vmatpush1.msra.mxu0 %v1214
      %1248 = vmatprep.subr.mxu0 0.0
      %1249 = vmatpush1.msra.mxu0 %v1213
      %1250 = vmatprep.subr.mxu0 0.0
      %1251 = vmatpush1.msra.mxu0 %v1212
      %1252 = vmatprep.subr.mxu0 0.0
      %1253 = vmatpush2.msra.mxu0 0.0
      %1254 = vmatprep.subr.mxu0 0.0
      %1255 = vmatpush2.msra.mxu0 0.0
      %1256 = vmatprep.subr.mxu0 0.0
      %1257 = vmatpush2.msra.mxu0 0.0
      %1258 = vmatprep.subr.mxu0 0.0
      %1259 = vmatpush2.msra.mxu0 0.0
      %1260 = vmatprep.subr.mxu0 0.0
      %1261 = vmatpush2.msra.mxu0 0.0
      %1262 = vmatprep.subr.mxu0 0.0
      %1263 = vmatpush2.msra.mxu0 0.0
      %1264 = vmatprep.subr.mxu0 0.0
      %1265 = vmatpush2.msra.mxu0 0.0
      %1266 = vmatprep.subr.mxu0 0.0
      %1267 = vmatpush2.msra.mxu0 0.0
      %1268 = vmatprep.subr.mxu0 0.0
      %1269 = vmatpush2.msra.mxu0 0.0
      %1270 = vmatprep.subr.mxu0 0.0
      %1271 = vmatpush2.msra.mxu0 0.0
      %1272 = vmatprep.subr.mxu0 0.0
      %1273 = vmatpush2.msra.mxu0 0.0
      %1274 = vmatprep.subr.mxu0 0.0
      %1275 = vmatpush2.msra.mxu0 0.0
      %1276 = vmatprep.subr.mxu0 0.0
      %1277 = vmatpush2.msra.mxu0 0.0
      %1278 = vmatprep.subr.mxu0 0.0
      %1279 = vmatpush2.msra.mxu0 0.0
      %1280 = vmatprep.subr.mxu0 0.0
      %1281 = vmatpush2.msra.mxu0 0.0
      %1282 = vmatprep.subr.mxu0 0.0
      %1283 = vmatpush2.msra.mxu0 0.0
      %1284 = vmatprep.mubr.f32.mxu0 0.0
      %1285 = vmatmul.mubr.f32.gmra.mxu0 %v1218
      %v1286 = vpop.f32.mrf.mxu0
      %v1287 = vadd.f32 0.0, %v1286
      %v1288 = vpop.f32.mrf.mxu0
      %1289 = vdwg.mxu0
      %vm1290 = vcmask 1024
      %1291 = vst.msk [vmem:[%s4] sm:$0x3] %vm1290, %v1287
    $region37: #{tpu_custom_call.1} parent=1 // pred_fallthru
      _
    // Predicated region
    $region38: #{tpu_custom_call.1} parent=1 // pred_check
      _
    $region39: #{tpu_custom_call.1} parent=1 // pred_check_branch
      %1293 = sbr.rel (0) target = $region41
    $region40: #{tpu_custom_call.1} parent=1 // pred_region
      _
    $region41: #{tpu_custom_call.1} parent=1 // pred_fallthru
      _
    // Predicated region
    $region42: #{tpu_custom_call.1} parent=1 // pred_check
      _
    $region43: #{tpu_custom_call.1} parent=1 // pred_check_branch
      %1295 = sbr.rel (0) target = $region45
    $region44: #{tpu_custom_call.1} parent=1 // pred_region
      _
    $region45: #{tpu_custom_call.1} parent=1 // pred_fallthru
      _
    %1296 = vsyncpa [#allocation4], 1
    %1297 = vsyncpa [#allocation6], 1

</llo_original>
